<compile_context>
chip_gen: v7x
topology: tpu7x:2x2x1
jax: 0.10.0
libtpu: 0.0.40
codegen_flags: <defaults>
</compile_context>

<pallas_src>
import functools

import jax
import jax.numpy as jnp
from jax import lax
from jax.experimental import pallas as pl
from jax.experimental.pallas import tpu as pltpu

KSIZE = 5
PAD = KSIZE // 2


def _res_conv_block_kernel(xrv_ref, xres_ref, w1_ref, b1_ref, w2f_ref,
                           w2pb_ref, bf_ref, out_ref, pad_ref,
                           *, H, W, C, Cout):
    # xrv_ref:  (1, H+4, W*C)   f32   relu(x), vertically zero-padded, folded
    # xres_ref: (1, H,   W*C)   f32   raw x, folded (residual)
    # w1_ref:   (5, W*C, W*C)   bf16  conv1 per-kh Toeplitz slabs (SAME clip baked in)
    # b1_ref:   (1, W*C)        f32   conv1 bias tiled over W
    # w2f_ref:  (5, W*C, W*Cout) bf16 fused depthwise*pointwise per-kh slabs
    # w2pb_ref: (W*C, W*Cout)   f32   block-diagonal pointwise (residual path)
    # bf_ref:   (1, W*Cout)     f32   fused bias (b2d @ w2p + b2p) tiled over W
    # out_ref:  (1, H, W*Cout)  f32   lane-dense output block
    # pad_ref:  VMEM scratch (H+4, W*C) f32 for the vertically padded relu(out1)
    WC = W * C

    # ---- conv1: 5 per-kh MXU matmuls; LHS rows come from the padded input block.
    xrv = xrv_ref[0]                                        # (H+4, W*C), loaded once
    acc1 = jnp.zeros((H, WC), jnp.float32)
    for kh in range(KSIZE):
        lhs = xrv[kh:kh + H, :].astype(jnp.bfloat16)
        acc1 = acc1 + jnp.dot(lhs, w1_ref[kh],
                              preferred_element_type=jnp.float32)
    h2 = jnp.maximum(acc1 + b1_ref[...], 0.0)               # relu(conv1 + b1), f32

    # ---- stash relu(out1) into the vertically padded scratch (3 full-width stores).
    # Borders are rewritten every step -> correct even if the grid axis is split
    # across TensorCores (scratch is per-core).
    zrow = jnp.zeros((PAD, WC), jnp.float32)
    pad_ref[pl.ds(0, PAD), :] = zrow
    pad_ref[pl.ds(PAD + H, PAD), :] = zrow
    pad_ref[pl.ds(PAD, H), :] = h2

    # ---- residual through the block-diagonal pointwise (f32 for skip-path accuracy)
    acc2 = jnp.dot(xres_ref[0], w2pb_ref[...],
                   preferred_element_type=jnp.float32)      # (H, W*Cout)

    # ---- fused depthwise*pointwise: 5 per-kh matmuls, lane-dense N = W*Cout.
    # LHS consumed directly from the VMEM scratch ref (sublane-only slices).
    for kh in range(KSIZE):
        lhs = pad_ref[pl.ds(kh, H), :].astype(jnp.bfloat16)
        acc2 = acc2 + jnp.dot(lhs, w2f_ref[kh],
                              preferred_element_type=jnp.float32)

    out_ref[0] = acc2 + bf_ref[...]
    # Pooling = Identity, Normalization = Identity -> nothing else to do.


def prepare_res_conv_block(params, W):
    """One-time (per parameter set / spatial width) weight preprocessing."""
    w1, b1, w2d, b2d, w2p, b2p = params
    C = w1.shape[2]
    Cout = w2p.shape[1]
    WC, WCout = W * C, W * Cout

    # Horizontal Toeplitz selector; SAME-conv boundary clipping is baked into the
    # weight slabs so the data never needs horizontal zero-padding.
    #   sel[kw, w_src, w_dst] = 1  iff  w_src == w_dst + kw - PAD
    sel = (jnp.arange(W)[None, :, None]
           == jnp.arange(W)[None, None, :]
           + jnp.arange(KSIZE)[:, None, None] - PAD).astype(jnp.float32)

    # conv1 per-kh slabs: slab[kh, w_src*C+ci, w_dst*C+co] = w1[kh, w_src-w_dst+PAD, ci, co]
    w1_slabs = jnp.einsum('kvw,akio->aviwo', sel, w1)
    w1_slabs = w1_slabs.reshape(KSIZE, WC, WC).astype(jnp.bfloat16)

    # fused depthwise*pointwise per-kh slabs: w2f[kh,kw,ci,co] = w2d[kh,kw,ci]*w2p[ci,co]
    w2f = w2d[:, :, :, None] * w2p[None, None, :, :]
    w2f_slabs = jnp.einsum('kvw,akio->aviwo', sel, w2f)
    w2f_slabs = w2f_slabs.reshape(KSIZE, WC, WCout).astype(jnp.bfloat16)

    # block-diagonal pointwise for the residual path (kept f32)
    w2p_blk = jnp.einsum('vw,io->viwo', jnp.eye(W, dtype=jnp.float32),
                         w2p).reshape(WC, WCout)

    # biases: conv1 bias tiled over W; depthwise bias folded through the pointwise.
    b1_t = jnp.tile(b1, (W,)).reshape(1, WC)
    bf_t = jnp.tile(b2d @ w2p + b2p, (W,)).reshape(1, WCout)
    return (w1_slabs, b1_t, w2f_slabs, w2p_blk, bf_t, C, Cout)


def res_conv_block(x_nchw, prepared):
    """Pallas forward. x_nchw: (B, C_in, H, W) float32 -> (B, C_out, H, W)."""
    w1_slabs, b1_t, w2f_slabs, w2p_blk, bf_t, C, Cout = prepared
    B, _, H, W = x_nchw.shape
    Hp = H + 2 * PAD
    WC, WCout = W * C, W * Cout

    # channel-folded layout: lane dim is W*C / W*Cout (lane-dense output = 128 lanes)
    x_folded = jnp.transpose(x_nchw, (0, 2, 3, 1)).reshape(B, H, WC).astype(jnp.float32)
    xrv = jnp.pad(jnp.maximum(x_folded, 0.0),
                  ((0, 0), (PAD, PAD), (0, 0)))              # (B, H+4, W*C), f32

    kernel = functools.partial(_res_conv_block_kernel, H=H, W=W, C=C, Cout=Cout)

    out_folded = pl.pallas_call(
        kernel,
        out_shape=jax.ShapeDtypeStruct((B, H, WCout), jnp.float32),
        grid_spec=pltpu.PrefetchScalarGridSpec(
            num_scalar_prefetch=0,
            grid=(B,),
            in_specs=[
                pl.BlockSpec((1, Hp, WC), lambda b: (b, 0, 0)),        # padded relu(x)
                pl.BlockSpec((1, H, WC), lambda b: (b, 0, 0)),         # residual x
                pl.BlockSpec((KSIZE, WC, WC), lambda b: (0, 0, 0)),    # conv1 slabs
                pl.BlockSpec((1, WC), lambda b: (0, 0)),               # b1 tiled
                pl.BlockSpec((KSIZE, WC, WCout), lambda b: (0, 0, 0)), # fused dw*pw slabs
                pl.BlockSpec((WC, WCout), lambda b: (0, 0)),           # block-diag w2p
                pl.BlockSpec((1, WCout), lambda b: (0, 0)),            # fused bias tiled
            ],
            out_specs=pl.BlockSpec((1, H, WCout), lambda b: (b, 0, 0)),
            scratch_shapes=[pltpu.VMEM((Hp, WC), jnp.float32)],
        ),
        compiler_params=pltpu.CompilerParams(
            dimension_semantics=("parallel",)),
    )(xrv, x_folded, w1_slabs, b1_t, w2f_slabs, w2p_blk, bf_t)

    out_nhwc = out_folded.reshape(B, H, W, Cout)
    return jnp.transpose(out_nhwc, (0, 3, 1, 2))


def res_conv_block_ref(x_nchw, params):
    """Pure-JAX (XLA conv) reference mirroring the PyTorch forward, NCHW."""
    w1, b1, w2d, b2d, w2p, b2p = params
    C = x_nchw.shape[1]
    dn = ('NCHW', 'OIHW', 'NCHW')
    prec = lax.Precision.HIGHEST
    relu = lambda a: jnp.maximum(a, 0.0)

    w1_oihw = jnp.transpose(w1, (3, 2, 0, 1))                  # (C, C, 5, 5)
    w2d_oihw = jnp.transpose(w2d, (2, 0, 1))[:, None, :, :]    # (C, 1, 5, 5)
    w2p_oihw = jnp.transpose(w2p, (1, 0))[:, :, None, None]    # (Cout, C, 1, 1)

    out = lax.conv_general_dilated(relu(x_nchw), w1_oihw, (1, 1), 'SAME',
                                   dimension_numbers=dn, precision=prec)
    out = out + b1[None, :, None, None]
    out = lax.conv_general_dilated(relu(out), w2d_oihw, (1, 1), 'SAME',
                                   dimension_numbers=dn, feature_group_count=C,
                                   precision=prec)
    out = out + b2d[None, :, None, None]
    out = out + x_nchw
    out = lax.conv_general_dilated(out, w2p_oihw, (1, 1), 'SAME',
                                   dimension_numbers=dn, precision=prec)
    out = out + b2p[None, :, None, None]
    return out


if __name__ == "__main__":
    B, C_IN, C_OUT, H, W = 2, 4, 8, 16, 16

    key = jax.random.PRNGKey(0)
    ks = jax.random.split(key, 7)
    # Deterministic synthetic parameters (shapes follow ResConvBlock.__init__).
    w1 = 0.1 * jax.random.normal(ks[0], (KSIZE, KSIZE, C_IN, C_IN), jnp.float32)
    b1 = 0.1 * jax.random.normal(ks[1], (C_IN,), jnp.float32)
    w2d = 0.1 * jax.random.normal(ks[2], (KSIZE, KSIZE, C_IN), jnp.float32)
    b2d = 0.1 * jax.random.normal(ks[3], (C_IN,), jnp.float32)
    w2p = 0.1 * jax.random.normal(ks[4], (C_IN, C_OUT), jnp.float32)
    b2p = 0.1 * jax.random.normal(ks[5], (C_OUT,), jnp.float32)
    params = (w1, b1, w2d, b2d, w2p, b2p)

    x = jax.random.normal(ks[6], (B, C_IN, H, W), jnp.float32)

    # Constant weight transforms hoisted: computed ONCE per parameter set.
    prepared = prepare_res_conv_block(params, W)

    out = res_conv_block(x, prepared)
    out = jax.block_until_ready(out)

    ref = res_conv_block_ref(x, params)
    assert out.shape == ref.shape == (B, C_OUT, H, W)
    max_err = float(jnp.max(jnp.abs(out - ref)))
    assert jnp.allclose(out, ref, rtol=2e-2, atol=2e-2), f"max abs err {max_err}"

    print("KERNEL_OK")
</pallas_src>

<mosaic_0001>
module attributes {stable_mosaic.version = 11 : i64} {
  func.func @_res_conv_block_kernel(%arg0: i32, %arg1: memref<1x20x64xf32, #tpu.memory_space<vmem>>, %arg2: memref<1x16x64xf32, #tpu.memory_space<vmem>>, %arg3: memref<5x64x64xbf16, #tpu.memory_space<vmem>>, %arg4: memref<1x64xf32, #tpu.memory_space<vmem>>, %arg5: memref<5x64x128xbf16, #tpu.memory_space<vmem>>, %arg6: memref<64x128xf32, #tpu.memory_space<vmem>>, %arg7: memref<1x128xf32, #tpu.memory_space<vmem>>, %arg8: memref<1x16x128xf32, #tpu.memory_space<vmem>>, %arg9: memref<20x64xf32, #tpu.memory_space<vmem>>) attributes {dimension_semantics = [#tpu.dimension_semantics<parallel>], iteration_bounds = array<i64: 2>, scalar_prefetch = 0 : i64, scratch_operands = 1 : i64, tpu.core_type = #tpu.core_type<tc>, window_params = [{transform_indices = @transform_0, window_bounds = array<i64: 1, 20, 64>}, {transform_indices = @transform_1, window_bounds = array<i64: 1, 16, 64>}, {pipeline_mode = #tpu.pipeline_mode<synchronous>, transform_indices = @transform_2, window_bounds = array<i64: 5, 64, 64>}, {pipeline_mode = #tpu.pipeline_mode<synchronous>, transform_indices = @transform_3, window_bounds = array<i64: 1, 64>}, {pipeline_mode = #tpu.pipeline_mode<synchronous>, transform_indices = @transform_4, window_bounds = array<i64: 5, 64, 128>}, {pipeline_mode = #tpu.pipeline_mode<synchronous>, transform_indices = @transform_5, window_bounds = array<i64: 64, 128>}, {pipeline_mode = #tpu.pipeline_mode<synchronous>, transform_indices = @transform_6, window_bounds = array<i64: 1, 128>}, {transform_indices = @transform_7, window_bounds = array<i64: 1, 16, 128>}]} {
    %c0 = arith.constant 0 : index
    %c0_0 = arith.constant 0 : index
    %c0_1 = arith.constant 0 : index
    %0 = vector.load %arg1[%c0, %c0_0, %c0_1] : memref<1x20x64xf32, #tpu.memory_space<vmem>>, vector<1x20x64xf32>
    %1 = vector.shape_cast %0 : vector<1x20x64xf32> to vector<20x64xf32>
    %cst = arith.constant 0.000000e+00 : f32
    %2 = vector.broadcast %cst : f32 to vector<16x64xf32>
    %3 = vector.extract_strided_slice %1 {offsets = [0, 0], sizes = [16, 64], strides = [1, 1]} : vector<20x64xf32> to vector<16x64xf32>
    %4 = arith.truncf %3 : vector<16x64xf32> to vector<16x64xbf16>
    %c0_2 = arith.constant 0 : index
    %c0_3 = arith.constant 0 : index
    %c0_4 = arith.constant 0 : index
    %5 = vector.load %arg3[%c0_2, %c0_3, %c0_4] : memref<5x64x64xbf16, #tpu.memory_space<vmem>>, vector<1x64x64xbf16>
    %6 = vector.shape_cast %5 : vector<1x64x64xbf16> to vector<64x64xbf16>
    %cst_5 = arith.constant dense<0.000000e+00> : vector<16x64xf32>
    %7 = tpu.matmul %4, %6, %cst_5 {dimension_numbers = #tpu.dot_dimension_numbers<[1], [0], [0], [1], [0, 0, 1, 1], [], []>} : vector<16x64xbf16>, vector<64x64xbf16>, vector<16x64xf32> -> vector<16x64xf32>
    %8 = arith.addf %2, %7 : vector<16x64xf32>
    %9 = vector.extract_strided_slice %1 {offsets = [1, 0], sizes = [16, 64], strides = [1, 1]} : vector<20x64xf32> to vector<16x64xf32>
    %10 = arith.truncf %9 : vector<16x64xf32> to vector<16x64xbf16>
    %c1 = arith.constant 1 : index
    %c0_6 = arith.constant 0 : index
    %c0_7 = arith.constant 0 : index
    %11 = vector.load %arg3[%c1, %c0_6, %c0_7] : memref<5x64x64xbf16, #tpu.memory_space<vmem>>, vector<1x64x64xbf16>
    %12 = vector.shape_cast %11 : vector<1x64x64xbf16> to vector<64x64xbf16>
    %cst_8 = arith.constant dense<0.000000e+00> : vector<16x64xf32>
    %13 = tpu.matmul %10, %12, %cst_8 {dimension_numbers = #tpu.dot_dimension_numbers<[1], [0], [0], [1], [0, 0, 1, 1], [], []>} : vector<16x64xbf16>, vector<64x64xbf16>, vector<16x64xf32> -> vector<16x64xf32>
    %14 = arith.addf %8, %13 : vector<16x64xf32>
    %15 = vector.extract_strided_slice %1 {offsets = [2, 0], sizes = [16, 64], strides = [1, 1]} : vector<20x64xf32> to vector<16x64xf32>
    %16 = arith.truncf %15 : vector<16x64xf32> to vector<16x64xbf16>
    %c2 = arith.constant 2 : index
    %c0_9 = arith.constant 0 : index
    %c0_10 = arith.constant 0 : index
    %17 = vector.load %arg3[%c2, %c0_9, %c0_10] : memref<5x64x64xbf16, #tpu.memory_space<vmem>>, vector<1x64x64xbf16>
    %18 = vector.shape_cast %17 : vector<1x64x64xbf16> to vector<64x64xbf16>
    %cst_11 = arith.constant dense<0.000000e+00> : vector<16x64xf32>
    %19 = tpu.matmul %16, %18, %cst_11 {dimension_numbers = #tpu.dot_dimension_numbers<[1], [0], [0], [1], [0, 0, 1, 1], [], []>} : vector<16x64xbf16>, vector<64x64xbf16>, vector<16x64xf32> -> vector<16x64xf32>
    %20 = arith.addf %14, %19 : vector<16x64xf32>
    %21 = vector.extract_strided_slice %1 {offsets = [3, 0], sizes = [16, 64], strides = [1, 1]} : vector<20x64xf32> to vector<16x64xf32>
    %22 = arith.truncf %21 : vector<16x64xf32> to vector<16x64xbf16>
    %c3 = arith.constant 3 : index
    %c0_12 = arith.constant 0 : index
    %c0_13 = arith.constant 0 : index
    %23 = vector.load %arg3[%c3, %c0_12, %c0_13] : memref<5x64x64xbf16, #tpu.memory_space<vmem>>, vector<1x64x64xbf16>
    %24 = vector.shape_cast %23 : vector<1x64x64xbf16> to vector<64x64xbf16>
    %cst_14 = arith.constant dense<0.000000e+00> : vector<16x64xf32>
    %25 = tpu.matmul %22, %24, %cst_14 {dimension_numbers = #tpu.dot_dimension_numbers<[1], [0], [0], [1], [0, 0, 1, 1], [], []>} : vector<16x64xbf16>, vector<64x64xbf16>, vector<16x64xf32> -> vector<16x64xf32>
    %26 = arith.addf %20, %25 : vector<16x64xf32>
    %27 = vector.extract_strided_slice %1 {offsets = [4, 0], sizes = [16, 64], strides = [1, 1]} : vector<20x64xf32> to vector<16x64xf32>
    %28 = arith.truncf %27 : vector<16x64xf32> to vector<16x64xbf16>
    %c4 = arith.constant 4 : index
    %c0_15 = arith.constant 0 : index
    %c0_16 = arith.constant 0 : index
    %29 = vector.load %arg3[%c4, %c0_15, %c0_16] : memref<5x64x64xbf16, #tpu.memory_space<vmem>>, vector<1x64x64xbf16>
    %30 = vector.shape_cast %29 : vector<1x64x64xbf16> to vector<64x64xbf16>
    %cst_17 = arith.constant dense<0.000000e+00> : vector<16x64xf32>
    %31 = tpu.matmul %28, %30, %cst_17 {dimension_numbers = #tpu.dot_dimension_numbers<[1], [0], [0], [1], [0, 0, 1, 1], [], []>} : vector<16x64xbf16>, vector<64x64xbf16>, vector<16x64xf32> -> vector<16x64xf32>
    %32 = arith.addf %26, %31 : vector<16x64xf32>
    %c0_18 = arith.constant 0 : index
    %c0_19 = arith.constant 0 : index
    %33 = vector.load %arg4[%c0_18, %c0_19] : memref<1x64xf32, #tpu.memory_space<vmem>>, vector<1x64xf32>
    %34 = vector.broadcast %33 : vector<1x64xf32> to vector<16x64xf32>
    %35 = arith.addf %32, %34 : vector<16x64xf32>
    %cst_20 = arith.constant 0.000000e+00 : f32
    %36 = vector.broadcast %cst_20 : f32 to vector<16x64xf32>
    %37 = arith.maximumf %35, %36 : vector<16x64xf32>
    %cst_21 = arith.constant 0.000000e+00 : f32
    %38 = vector.broadcast %cst_21 : f32 to vector<2x64xf32>
    %c0_22 = arith.constant 0 : index
    %c0_23 = arith.constant 0 : index
    %39 = vector.load %arg9[%c0_22, %c0_23] : memref<20x64xf32, #tpu.memory_space<vmem>>, vector<2x64xf32>
    tpu.vector_store %arg9[%c0_22, %c0_23], %38 {strides = array<i32>} : memref<20x64xf32, #tpu.memory_space<vmem>>, vector<2x64xf32>,
    %c18 = arith.constant 18 : index
    %c0_24 = arith.constant 0 : index
    %40 = vector.load %arg9[%c18, %c0_24] : memref<20x64xf32, #tpu.memory_space<vmem>>, vector<2x64xf32>
    tpu.vector_store %arg9[%c18, %c0_24], %38 {strides = array<i32>} : memref<20x64xf32, #tpu.memory_space<vmem>>, vector<2x64xf32>,
    %c2_25 = arith.constant 2 : index
    %c0_26 = arith.constant 0 : index
    %41 = vector.load %arg9[%c2_25, %c0_26] : memref<20x64xf32, #tpu.memory_space<vmem>>, vector<16x64xf32>
    tpu.vector_store %arg9[%c2_25, %c0_26], %37 {strides = array<i32>} : memref<20x64xf32, #tpu.memory_space<vmem>>, vector<16x64xf32>,
    %c0_27 = arith.constant 0 : index
    %c0_28 = arith.constant 0 : index
    %c0_29 = arith.constant 0 : index
    %42 = vector.load %arg2[%c0_27, %c0_28, %c0_29] : memref<1x16x64xf32, #tpu.memory_space<vmem>>, vector<1x16x64xf32>
    %43 = vector.shape_cast %42 : vector<1x16x64xf32> to vector<16x64xf32>
    %c0_30 = arith.constant 0 : index
    %c0_31 = arith.constant 0 : index
    %44 = vector.load %arg6[%c0_30, %c0_31] : memref<64x128xf32, #tpu.memory_space<vmem>>, vector<64x128xf32>
    %cst_32 = arith.constant dense<0.000000e+00> : vector<16x128xf32>
    %45 = tpu.matmul %43, %44, %cst_32 {dimension_numbers = #tpu.dot_dimension_numbers<[1], [0], [0], [1], [0, 0, 1, 1], [], []>} : vector<16x64xf32>, vector<64x128xf32>, vector<16x128xf32> -> vector<16x128xf32>
    %c0_33 = arith.constant 0 : index
    %c0_34 = arith.constant 0 : index
    %46 = vector.load %arg9[%c0_33, %c0_34] : memref<20x64xf32, #tpu.memory_space<vmem>>, vector<16x64xf32>
    %47 = arith.truncf %46 : vector<16x64xf32> to vector<16x64xbf16>
    %c0_35 = arith.constant 0 : index
    %c0_36 = arith.constant 0 : index
    %c0_37 = arith.constant 0 : index
    %48 = vector.load %arg5[%c0_35, %c0_36, %c0_37] : memref<5x64x128xbf16, #tpu.memory_space<vmem>>, vector<1x64x128xbf16>
    %49 = vector.shape_cast %48 : vector<1x64x128xbf16> to vector<64x128xbf16>
    %cst_38 = arith.constant dense<0.000000e+00> : vector<16x128xf32>
    %50 = tpu.matmul %47, %49, %cst_38 {dimension_numbers = #tpu.dot_dimension_numbers<[1], [0], [0], [1], [0, 0, 1, 1], [], []>} : vector<16x64xbf16>, vector<64x128xbf16>, vector<16x128xf32> -> vector<16x128xf32>
    %51 = arith.addf %45, %50 : vector<16x128xf32>
    %c1_39 = arith.constant 1 : index
    %c0_40 = arith.constant 0 : index
    %52 = vector.load %arg9[%c1_39, %c0_40] : memref<20x64xf32, #tpu.memory_space<vmem>>, vector<16x64xf32>
    %53 = arith.truncf %52 : vector<16x64xf32> to vector<16x64xbf16>
    %c1_41 = arith.constant 1 : index
    %c0_42 = arith.constant 0 : index
    %c0_43 = arith.constant 0 : index
    %54 = vector.load %arg5[%c1_41, %c0_42, %c0_43] : memref<5x64x128xbf16, #tpu.memory_space<vmem>>, vector<1x64x128xbf16>
    %55 = vector.shape_cast %54 : vector<1x64x128xbf16> to vector<64x128xbf16>
    %cst_44 = arith.constant dense<0.000000e+00> : vector<16x128xf32>
    %56 = tpu.matmul %53, %55, %cst_44 {dimension_numbers = #tpu.dot_dimension_numbers<[1], [0], [0], [1], [0, 0, 1, 1], [], []>} : vector<16x64xbf16>, vector<64x128xbf16>, vector<16x128xf32> -> vector<16x128xf32>
    %57 = arith.addf %51, %56 : vector<16x128xf32>
    %c2_45 = arith.constant 2 : index
    %c0_46 = arith.constant 0 : index
    %58 = vector.load %arg9[%c2_45, %c0_46] : memref<20x64xf32, #tpu.memory_space<vmem>>, vector<16x64xf32>
    %59 = arith.truncf %58 : vector<16x64xf32> to vector<16x64xbf16>
    %c2_47 = arith.constant 2 : index
    %c0_48 = arith.constant 0 : index
    %c0_49 = arith.constant 0 : index
    %60 = vector.load %arg5[%c2_47, %c0_48, %c0_49] : memref<5x64x128xbf16, #tpu.memory_space<vmem>>, vector<1x64x128xbf16>
    %61 = vector.shape_cast %60 : vector<1x64x128xbf16> to vector<64x128xbf16>
    %cst_50 = arith.constant dense<0.000000e+00> : vector<16x128xf32>
    %62 = tpu.matmul %59, %61, %cst_50 {dimension_numbers = #tpu.dot_dimension_numbers<[1], [0], [0], [1], [0, 0, 1, 1], [], []>} : vector<16x64xbf16>, vector<64x128xbf16>, vector<16x128xf32> -> vector<16x128xf32>
    %63 = arith.addf %57, %62 : vector<16x128xf32>
    %c3_51 = arith.constant 3 : index
    %c0_52 = arith.constant 0 : index
    %64 = vector.load %arg9[%c3_51, %c0_52] : memref<20x64xf32, #tpu.memory_space<vmem>>, vector<16x64xf32>
    %65 = arith.truncf %64 : vector<16x64xf32> to vector<16x64xbf16>
    %c3_53 = arith.constant 3 : index
    %c0_54 = arith.constant 0 : index
    %c0_55 = arith.constant 0 : index
    %66 = vector.load %arg5[%c3_53, %c0_54, %c0_55] : memref<5x64x128xbf16, #tpu.memory_space<vmem>>, vector<1x64x128xbf16>
    %67 = vector.shape_cast %66 : vector<1x64x128xbf16> to vector<64x128xbf16>
    %cst_56 = arith.constant dense<0.000000e+00> : vector<16x128xf32>
    %68 = tpu.matmul %65, %67, %cst_56 {dimension_numbers = #tpu.dot_dimension_numbers<[1], [0], [0], [1], [0, 0, 1, 1], [], []>} : vector<16x64xbf16>, vector<64x128xbf16>, vector<16x128xf32> -> vector<16x128xf32>
    %69 = arith.addf %63, %68 : vector<16x128xf32>
    %c4_57 = arith.constant 4 : index
    %c0_58 = arith.constant 0 : index
    %70 = vector.load %arg9[%c4_57, %c0_58] : memref<20x64xf32, #tpu.memory_space<vmem>>, vector<16x64xf32>
    %71 = arith.truncf %70 : vector<16x64xf32> to vector<16x64xbf16>
    %c4_59 = arith.constant 4 : index
    %c0_60 = arith.constant 0 : index
    %c0_61 = arith.constant 0 : index
    %72 = vector.load %arg5[%c4_59, %c0_60, %c0_61] : memref<5x64x128xbf16, #tpu.memory_space<vmem>>, vector<1x64x128xbf16>
    %73 = vector.shape_cast %72 : vector<1x64x128xbf16> to vector<64x128xbf16>
    %cst_62 = arith.constant dense<0.000000e+00> : vector<16x128xf32>
    %74 = tpu.matmul %71, %73, %cst_62 {dimension_numbers = #tpu.dot_dimension_numbers<[1], [0], [0], [1], [0, 0, 1, 1], [], []>} : vector<16x64xbf16>, vector<64x128xbf16>, vector<16x128xf32> -> vector<16x128xf32>
    %75 = arith.addf %69, %74 : vector<16x128xf32>
    %c0_63 = arith.constant 0 : index
    %c0_64 = arith.constant 0 : index
    %76 = vector.load %arg7[%c0_63, %c0_64] : memref<1x128xf32, #tpu.memory_space<vmem>>, vector<1x128xf32>
    %77 = vector.broadcast %76 : vector<1x128xf32> to vector<16x128xf32>
    %78 = arith.addf %75, %77 : vector<16x128xf32>
    %c0_65 = arith.constant 0 : index
    %c0_66 = arith.constant 0 : index
    %c0_67 = arith.constant 0 : index
    %79 = vector.load %arg8[%c0_65, %c0_66, %c0_67] : memref<1x16x128xf32, #tpu.memory_space<vmem>>, vector<1x16x128xf32>
    %80 = vector.shape_cast %79 : vector<1x16x128xf32> to vector<16x128xf32>
    %81 = vector.shape_cast %78 : vector<16x128xf32> to vector<1x16x128xf32>
    tpu.vector_store %arg8[%c0_65, %c0_66, %c0_67], %81 {strides = array<i32>} : memref<1x16x128xf32, #tpu.memory_space<vmem>>, vector<1x16x128xf32>,
    return
  }
  func.func @transform_0(%arg0: i32) -> (i32, i32, i32) {
    %c0_i32 = arith.constant 0 : i32
    %c0_i32_0 = arith.constant 0 : i32
    %c0_i32_1 = arith.constant 0 : i32
    return %arg0, %c0_i32, %c0_i32_0 : i32, i32, i32
  }
  func.func @transform_1(%arg0: i32) -> (i32, i32, i32) {
    %c0_i32 = arith.constant 0 : i32
    %c0_i32_0 = arith.constant 0 : i32
    %c0_i32_1 = arith.constant 0 : i32
    return %arg0, %c0_i32, %c0_i32_0 : i32, i32, i32
  }
  func.func @transform_2(%arg0: i32) -> (i32, i32, i32) {
    %c0_i32 = arith.constant 0 : i32
    %c0_i32_0 = arith.constant 0 : i32
    %c0_i32_1 = arith.constant 0 : i32
    %c0_i32_2 = arith.constant 0 : i32
    return %c0_i32, %c0_i32_0, %c0_i32_1 : i32, i32, i32
  }
  func.func @transform_3(%arg0: i32) -> (i32, i32) {
    %c0_i32 = arith.constant 0 : i32
    %c0_i32_0 = arith.constant 0 : i32
    %c0_i32_1 = arith.constant 0 : i32
    return %c0_i32, %c0_i32_0 : i32, i32
  }
  func.func @transform_4(%arg0: i32) -> (i32, i32, i32) {
    %c0_i32 = arith.constant 0 : i32
    %c0_i32_0 = arith.constant 0 : i32
    %c0_i32_1 = arith.constant 0 : i32
    %c0_i32_2 = arith.constant 0 : i32
    return %c0_i32, %c0_i32_0, %c0_i32_1 : i32, i32, i32
  }
  func.func @transform_5(%arg0: i32) -> (i32, i32) {
    %c0_i32 = arith.constant 0 : i32
    %c0_i32_0 = arith.constant 0 : i32
    %c0_i32_1 = arith.constant 0 : i32
    return %c0_i32, %c0_i32_0 : i32, i32
  }
  func.func @transform_6(%arg0: i32) -> (i32, i32) {
    %c0_i32 = arith.constant 0 : i32
    %c0_i32_0 = arith.constant 0 : i32
    %c0_i32_1 = arith.constant 0 : i32
    return %c0_i32, %c0_i32_0 : i32, i32
  }
  func.func @transform_7(%arg0: i32) -> (i32, i32, i32) {
    %c0_i32 = arith.constant 0 : i32
    %c0_i32_0 = arith.constant 0 : i32
    %c0_i32_1 = arith.constant 0 : i32
    return %arg0, %c0_i32, %c0_i32_0 : i32, i32, i32
  }
}

</mosaic_0001>

<llo_original>
// kernel: tpu_custom_call.1
$region0: #{tpu_custom_call.1}
  #allocation0 [shape = 'u32[]', space=smem, size = 0x4, offset = 0x4, fixed_abs, tag = 'smem constant byte address 0x4 - core index']
  #allocation1 [shape = 'u32[144,128]{1,0:T(1,128)}', space=vmem, size = 0x12000, scoped, tag = 'internal scratch']
  #allocation2 [shape = 'f32[20,64]{1,0:T(8,128)}', space=vmem, size = 0x3000, scoped, tag = 'scratch operand']
  %s0 = inlined_call_operand.vmem [shape: f32[2,20,64], index: 0, kind: input, shape index: {}]
  %s1 = inlined_call_operand.vmem [shape: f32[2,16,64], index: 1, kind: input, shape index: {}]
  %s2 = inlined_call_operand.hbm [shape: bf16[5,64,64], index: 2, kind: input, shape index: {}]
  %s3 = inlined_call_operand.vmem [shape: f32[1,64], index: 3, kind: input, shape index: {}]
  %s4 = inlined_call_operand.hbm [shape: bf16[5,64,128], index: 4, kind: input, shape index: {}]
  %s5 = inlined_call_operand.vmem [shape: f32[64,128], index: 5, kind: input, shape index: {}]
  %s6 = inlined_call_operand.vmem [shape: f32[1,128], index: 6, kind: input, shape index: {}]
  %s7 = inlined_call_operand.hbm [shape: f32[2,16,128], index: 7, kind: output, shape index: {}]
  %s8 = sld [smem:[#allocation0]]
  $region69: #{tpu_custom_call.1} parent=0
    _
  %s10 = ssub.s32 1, %s8
  %s11 = scalar_select 0, %s10, %s8
  $region1: #{tpu_custom_call.1} parent=0
    #allocation3 [shape = 'u8[81920]{0}', space=vmem, size = 0x14000, scoped, tag = 'input window, operand 2, single buffered']
    #allocation4 [shape = 's32[2]{0}', space=sflag, size = 0x8, scoped, tag = 'scoped memory for tpu_custom_call.1']
    #allocation5 [shape = 's32[2]{0}', space=sflag, size = 0x8, scoped, tag = 'scoped memory for tpu_custom_call.1']
    #allocation6 [shape = 'u8[81920]{0}', space=vmem, size = 0x14000, scoped, tag = 'input window, operand 4, single buffered']
    #allocation7 [shape = 's32[1]{0}', space=sflag, size = 0x4, scoped, tag = 'scoped memory for tpu_custom_call.1']
    #allocation8 [shape = 'u8[16384]{0}', space=vmem, size = 0x4000, scoped, tag = 'output window, operand 0']
    %12 = vsyncpa [#allocation4], 0
    %13 = vsyncpa [#allocation7], 0
    %14 = vsyncpa [#allocation5], 0
    %s15 = scalar_lea.sflag [#allocation5], 1
    %16 = vsyncpa %s15, 0
    loop: start=0, step=1, limit=4
    $region2: #{tpu_custom_call.1} parent=1 // loop_pre_header
      _
    $region3: #{tpu_custom_call.1} parent=1 // loop_header
      %s18 = sphi 0, %s22
      %p19 = scmp.ge.s32.totalorder %s18, 4
      %s28 = sphi 0, %s30
      %s31 = sphi 0, %s28
      %s32 = sphi 0, %s31
      %s48 = sphi 0, %s32
      %s54 = sphi 0, %s56
      %s57 = sphi 0, %s54
      %s58 = sphi 0, %s57
      %s74 = sphi 0, %s58
      %s78 = sphi 0, %s78
      %s80 = sphi 0, %s78
      %s81 = sphi 0, %s80
      %s95 = sphi 0, %s81
      %s99 = sphi 0, %s99
      %s101 = sphi 0, %s99
      %s102 = sphi 0, %s101
      %s116 = sphi 0, %s102
      %s120 = sphi 0, %s120
      %s122 = sphi 0, %s120
      %s123 = sphi 0, %s122
      %s137 = sphi 0, %s123
      %s141 = sphi 0, %s141
      %s143 = sphi 0, %s141
      %s144 = sphi 0, %s143
      %s158 = sphi 0, %s144
      %s162 = sphi 0, %s162
      %s164 = sphi 0, %s162
      %s165 = sphi 0, %s164
      %s179 = sphi 0, %s165
      %s185 = sphi 0, %s187
      %s188 = sphi 0, %s185
      %s189 = sphi 0, %s188
      %s205 = sphi 0, %s189
    $region4: #{tpu_custom_call.1} parent=1 // loop_header_branch
      %21 = sbr.rel (%p19) target = $region8
    $region5: #{tpu_custom_call.1} parent=1 // loop_body
      %s23 = ssub.s32 %s18, 1
      %s24 = ssub.s32 %s18, 2
      %s25 = sadd.s32 %s18, 1
      %s26 = ssub.s32 %s18, %s25
      %p27 = scmp.eq.s32.totalorder %s26, 0
      %s29 = sadd.s32 %s28, 1
      %s30 = scalar_select %p27, %s28, %s29
      %p33 = pneg %p27
      %p34 = scmp.eq.s32.totalorder %s18, 1
      %p35 = por %p33, %p34
      %p36 = scmp.ne.s32.totalorder %s28, %s31
      %p37 = scmp.eq.s32.totalorder %s18, 0
      %p38 = por %p36, %p37
      %p39 = scmp.ne.s32.totalorder %s28, %s31
      %p40 = scmp.eq.s32.totalorder %s23, 1
      %p41 = por %p39, %p40
      %p42 = scmp.ne.s32.totalorder %s31, %s32
      %p43 = scmp.eq.s32.totalorder %s23, 0
      %p44 = por %p42, %p43
      %p45 = scmp.ne.s32.totalorder %s31, %s32
      %p46 = scmp.eq.s32.totalorder %s24, 1
      %p47 = por %p45, %p46
      %p49 = scmp.ne.s32.totalorder %s32, %s48
      %p50 = scmp.eq.s32.totalorder %s24, 0
      %p51 = por %p49, %p50
      %s52 = ssub.s32 %s18, %s25
      %p53 = scmp.eq.s32.totalorder %s52, 0
      %s55 = sadd.s32 %s54, 1
      %s56 = scalar_select %p53, %s54, %s55
      %p59 = pneg %p53
      %p60 = scmp.eq.s32.totalorder %s18, 1
      %p61 = por %p59, %p60
      %p62 = scmp.ne.s32.totalorder %s54, %s57
      %p63 = scmp.eq.s32.totalorder %s18, 0
      %p64 = por %p62, %p63
      %p65 = scmp.ne.s32.totalorder %s54, %s57
      %p66 = scmp.eq.s32.totalorder %s23, 1
      %p67 = por %p65, %p66
      %p68 = scmp.ne.s32.totalorder %s57, %s58
      %p69 = scmp.eq.s32.totalorder %s23, 0
      %p70 = por %p68, %p69
      %p71 = scmp.ne.s32.totalorder %s57, %s58
      %p72 = scmp.eq.s32.totalorder %s24, 1
      %p73 = por %p71, %p72
      %p75 = scmp.ne.s32.totalorder %s58, %s74
      %p76 = scmp.eq.s32.totalorder %s24, 0
      %p77 = por %p75, %p76
      %s79 = sadd.s32 %s78, 1
      %p82 = scmp.eq.s32.totalorder %s18, 1
      %p83 = scmp.ne.s32.totalorder %s78, %s80
      %p84 = scmp.eq.s32.totalorder %s18, 0
      %p85 = por %p83, %p84
      %p86 = scmp.ne.s32.totalorder %s78, %s80
      %p87 = scmp.eq.s32.totalorder %s23, 1
      %p88 = por %p86, %p87
      %p89 = scmp.ne.s32.totalorder %s80, %s81
      %p90 = scmp.eq.s32.totalorder %s23, 0
      %p91 = por %p89, %p90
      %p92 = scmp.ne.s32.totalorder %s80, %s81
      %p93 = scmp.eq.s32.totalorder %s24, 1
      %p94 = por %p92, %p93
      %p96 = scmp.ne.s32.totalorder %s81, %s95
      %p97 = scmp.eq.s32.totalorder %s24, 0
      %p98 = por %p96, %p97
      %s100 = sadd.s32 %s99, 1
      %p103 = scmp.eq.s32.totalorder %s18, 1
      %p104 = scmp.ne.s32.totalorder %s99, %s101
      %p105 = scmp.eq.s32.totalorder %s18, 0
      %p106 = por %p104, %p105
      %p107 = scmp.ne.s32.totalorder %s99, %s101
      %p108 = scmp.eq.s32.totalorder %s23, 1
      %p109 = por %p107, %p108
      %p110 = scmp.ne.s32.totalorder %s101, %s102
      %p111 = scmp.eq.s32.totalorder %s23, 0
      %p112 = por %p110, %p111
      %p113 = scmp.ne.s32.totalorder %s101, %s102
      %p114 = scmp.eq.s32.totalorder %s24, 1
      %p115 = por %p113, %p114
      %p117 = scmp.ne.s32.totalorder %s102, %s116
      %p118 = scmp.eq.s32.totalorder %s24, 0
      %p119 = por %p117, %p118
      %s121 = sadd.s32 %s120, 1
      %p124 = scmp.eq.s32.totalorder %s18, 1
      %p125 = scmp.ne.s32.totalorder %s120, %s122
      %p126 = scmp.eq.s32.totalorder %s18, 0
      %p127 = por %p125, %p126
      %p128 = scmp.ne.s32.totalorder %s120, %s122
      %p129 = scmp.eq.s32.totalorder %s23, 1
      %p130 = por %p128, %p129
      %p131 = scmp.ne.s32.totalorder %s122, %s123
      %p132 = scmp.eq.s32.totalorder %s23, 0
      %p133 = por %p131, %p132
      %p134 = scmp.ne.s32.totalorder %s122, %s123
      %p135 = scmp.eq.s32.totalorder %s24, 1
      %p136 = por %p134, %p135
      %p138 = scmp.ne.s32.totalorder %s123, %s137
      %p139 = scmp.eq.s32.totalorder %s24, 0
      %p140 = por %p138, %p139
      %s142 = sadd.s32 %s141, 1
      %p145 = scmp.eq.s32.totalorder %s18, 1
      %p146 = scmp.ne.s32.totalorder %s141, %s143
      %p147 = scmp.eq.s32.totalorder %s18, 0
      %p148 = por %p146, %p147
      %p149 = scmp.ne.s32.totalorder %s141, %s143
      %p150 = scmp.eq.s32.totalorder %s23, 1
      %p151 = por %p149, %p150
      %p152 = scmp.ne.s32.totalorder %s143, %s144
      %p153 = scmp.eq.s32.totalorder %s23, 0
      %p154 = por %p152, %p153
      %p155 = scmp.ne.s32.totalorder %s143, %s144
      %p156 = scmp.eq.s32.totalorder %s24, 1
      %p157 = por %p155, %p156
      %p159 = scmp.ne.s32.totalorder %s144, %s158
      %p160 = scmp.eq.s32.totalorder %s24, 0
      %p161 = por %p159, %p160
      %s163 = sadd.s32 %s162, 1
      %p166 = scmp.eq.s32.totalorder %s18, 1
      %p167 = scmp.ne.s32.totalorder %s162, %s164
      %p168 = scmp.eq.s32.totalorder %s18, 0
      %p169 = por %p167, %p168
      %p170 = scmp.ne.s32.totalorder %s162, %s164
      %p171 = scmp.eq.s32.totalorder %s23, 1
      %p172 = por %p170, %p171
      %p173 = scmp.ne.s32.totalorder %s164, %s165
      %p174 = scmp.eq.s32.totalorder %s23, 0
      %p175 = por %p173, %p174
      %p176 = scmp.ne.s32.totalorder %s164, %s165
      %p177 = scmp.eq.s32.totalorder %s24, 1
      %p178 = por %p176, %p177
      %p180 = scmp.ne.s32.totalorder %s165, %s179
      %p181 = scmp.eq.s32.totalorder %s24, 0
      %p182 = por %p180, %p181
      %s183 = ssub.s32 %s18, %s25
      %p184 = scmp.eq.s32.totalorder %s183, 0
      %s186 = sadd.s32 %s185, 1
      %s187 = scalar_select %p184, %s185, %s186
      %p190 = pneg %p184
      %p191 = scmp.eq.s32.totalorder %s18, 1
      %p192 = por %p190, %p191
      %p193 = scmp.ne.s32.totalorder %s185, %s188
      %p194 = scmp.eq.s32.totalorder %s18, 0
      %p195 = por %p193, %p194
      %p196 = scmp.ne.s32.totalorder %s185, %s188
      %p197 = scmp.eq.s32.totalorder %s23, 1
      %p198 = por %p196, %p197
      %p199 = scmp.ne.s32.totalorder %s188, %s189
      %p200 = scmp.eq.s32.totalorder %s23, 0
      %p201 = por %p199, %p200
      %p202 = scmp.ne.s32.totalorder %s188, %s189
      %p203 = scmp.eq.s32.totalorder %s24, 1
      %p204 = por %p202, %p203
      %p206 = scmp.ne.s32.totalorder %s189, %s205
      %p207 = scmp.eq.s32.totalorder %s24, 0
      %p208 = por %p206, %p207
      %p209 = scmp.le.s32.totalorder 1, %s18
      %p210 = scmp.lt.s32.totalorder %s18, 3
      %p211 = pnand %p209, %p210
      %p212 = pneg %p211
      // Predicated region
      $region9: #{tpu_custom_call.1} parent=5 // pred_check
        _
      $region10: #{tpu_custom_call.1} parent=5 // pred_check_branch
        %214 = sbr.rel (%p211) target = $region12
      $region11: #{tpu_custom_call.1} parent=5 // pred_region
        %s215 = ssub.s32 %s18, 1
        // Predicated region
        $region13: #{tpu_custom_call.1} parent=11 // pred_check
          %p216 = pneg %p91
        $region14: #{tpu_custom_call.1} parent=11 // pred_check_branch
          %218 = sbr.rel (%p216) target = $region16
        $region15: #{tpu_custom_call.1} parent=11 // pred_region
          %s220 = ssub.s32 2560, 2560
          %221 = vsyncadd [#allocation4], %s220
          %s222 = sshll.u32 [#allocation3], 4
          %s223 = int_to_ptr.vmem [resolvable:$true] %s222
          %228 = dma.hbm_to_vmem [thread:$0]  %s2, 2560, %s223, [#allocation4], 64, 64, 4
        $region16: #{tpu_custom_call.1} parent=11 // pred_fallthru
          _
        // Predicated region
        $region17: #{tpu_custom_call.1} parent=11 // pred_check
          %p229 = pneg %p112
        $region18: #{tpu_custom_call.1} parent=11 // pred_check_branch
          %231 = sbr.rel (%p229) target = $region20
        $region19: #{tpu_custom_call.1} parent=11 // pred_region
          _
        $region20: #{tpu_custom_call.1} parent=11 // pred_fallthru
          _
        // Predicated region
        $region21: #{tpu_custom_call.1} parent=11 // pred_check
          %p232 = pneg %p133
        $region22: #{tpu_custom_call.1} parent=11 // pred_check_branch
          %234 = sbr.rel (%p232) target = $region24
        $region23: #{tpu_custom_call.1} parent=11 // pred_region
          %s236 = ssub.s32 2560, 2560
          %237 = vsyncadd [#allocation7], %s236
          %s238 = sshll.u32 [#allocation6], 4
          %s239 = int_to_ptr.vmem [resolvable:$true] %s238
          %244 = dma.hbm_to_vmem [thread:$0]  %s4, 2560, %s239, [#allocation7], 64, 64, 4
        $region24: #{tpu_custom_call.1} parent=11 // pred_fallthru
          _
        // Predicated region
        $region25: #{tpu_custom_call.1} parent=11 // pred_check
          %p245 = pneg %p154
        $region26: #{tpu_custom_call.1} parent=11 // pred_check_branch
          %247 = sbr.rel (%p245) target = $region28
        $region27: #{tpu_custom_call.1} parent=11 // pred_region
          _
        $region28: #{tpu_custom_call.1} parent=11 // pred_fallthru
          _
        // Predicated region
        $region29: #{tpu_custom_call.1} parent=11 // pred_check
          %p248 = pneg %p175
        $region30: #{tpu_custom_call.1} parent=11 // pred_check_branch
          %250 = sbr.rel (%p248) target = $region32
        $region31: #{tpu_custom_call.1} parent=11 // pred_region
          _
        $region32: #{tpu_custom_call.1} parent=11 // pred_fallthru
          _
      $region12: #{tpu_custom_call.1} parent=5 // pred_fallthru
        _
      %p251 = scmp.lt.s32.totalorder %s18, 2
      // Predicated region
      $region33: #{tpu_custom_call.1} parent=5 // pred_check
        %p252 = pneg %p251
      $region34: #{tpu_custom_call.1} parent=5 // pred_check_branch
        %254 = sbr.rel (%p252) target = $region36
      $region35: #{tpu_custom_call.1} parent=5 // pred_region
        // Predicated region
        $region37: #{tpu_custom_call.1} parent=35 // pred_check
          %p255 = pneg %p38
        $region38: #{tpu_custom_call.1} parent=35 // pred_check_branch
          %257 = sbr.rel (%p255) target = $region40
        $region39: #{tpu_custom_call.1} parent=35 // pred_region
          %p258 = scmp.lt.s32.totalorder %s18, 1
          %s259 = scalar_select %p258, %s18, 1
          %s260 = smul.addr %s259, 3
          %s261 = smul.addr %s260, 8
          %s262 = scalar_lea.vmem %s0, %s261
        $region40: #{tpu_custom_call.1} parent=35 // pred_fallthru
          _
        // Predicated region
        $region41: #{tpu_custom_call.1} parent=35 // pred_check
          %p263 = pneg %p64
        $region42: #{tpu_custom_call.1} parent=35 // pred_check_branch
          %265 = sbr.rel (%p263) target = $region44
        $region43: #{tpu_custom_call.1} parent=35 // pred_region
          %p266 = scmp.lt.s32.totalorder %s18, 1
          %s267 = scalar_select %p266, %s18, 1
          %s268 = smul.addr %s267, 2
          %s269 = smul.addr %s268, 8
          %s270 = scalar_lea.vmem %s1, %s269
        $region44: #{tpu_custom_call.1} parent=35 // pred_fallthru
          _
      $region36: #{tpu_custom_call.1} parent=5 // pred_fallthru
        _
      %p271 = scmp.le.s32.totalorder 1, %s18
      %p272 = scmp.lt.s32.totalorder %s18, 3
      %p273 = pnand %p271, %p272
      %p274 = pneg %p273
      // Predicated region
      $region45: #{tpu_custom_call.1} parent=5 // pred_check
        _
      $region46: #{tpu_custom_call.1} parent=5 // pred_check_branch
        %276 = sbr.rel (%p273) target = $region48
      $region47: #{tpu_custom_call.1} parent=5 // pred_region
        %s277 = ssub.s32 %s18, 1
        // Predicated region
        $region49: #{tpu_custom_call.1} parent=47 // pred_check
          %p278 = pneg %p91
        $region50: #{tpu_custom_call.1} parent=47 // pred_check_branch
          %280 = sbr.rel (%p278) target = $region52
        $region51: #{tpu_custom_call.1} parent=47 // pred_region
          %281 = dma.done [#allocation4], 2560
        $region52: #{tpu_custom_call.1} parent=47 // pred_fallthru
          _
        // Predicated region
        $region53: #{tpu_custom_call.1} parent=47 // pred_check
          %p282 = pneg %p133
        $region54: #{tpu_custom_call.1} parent=47 // pred_check_branch
          %284 = sbr.rel (%p282) target = $region56
        $region55: #{tpu_custom_call.1} parent=47 // pred_region
          %285 = dma.done [#allocation7], 2560
        $region56: #{tpu_custom_call.1} parent=47 // pred_fallthru
          _
        %p286 = scmp.lt.s32.totalorder %s23, 1
        %s287 = scalar_select %p286, %s23, 1
        %s288 = smul.addr %s287, 3
        %s289 = smul.addr %s288, 8
        %s290 = scalar_lea.vmem %s0, %s289
        %p291 = pneg %p44
        %p292 = pneg %p41
        %p293 = scmp.lt.s32.totalorder %s23, 1
        %s294 = scalar_select %p293, %s23, 1
        %s295 = smul.addr %s294, 2
        %s296 = smul.addr %s295, 8
        %s297 = scalar_lea.vmem %s1, %s296
        %p298 = pneg %p70
        %p299 = pneg %p67
        %p300 = pneg %p91
        %p301 = pneg %p88
        %p302 = pneg %p112
        %p303 = pneg %p109
        %p304 = pneg %p133
        %p305 = pneg %p130
        %p306 = pneg %p154
        %p307 = pneg %p151
        %p308 = pneg %p175
        %p309 = pneg %p172
        %p310 = pneg %p201
        %p311 = pneg %p198
        %s312 = sand.u32 %s188, 1
        %s313 = scalar_lea.sflag [#allocation5], %s312
        %s314 = sand.u32 %s188, 1
        %s315 = smul.addr %s314, 16
        %s316 = scalar_lea.vmem [#allocation8], %s315
        %p317 = scmp.lt.s32.totalorder %s23, 1
        %s318 = scalar_select %p317, %s23, 1
        %s319 = smul.addr %s318, 3
        %s320 = smul.addr %s319, 8
        %s321 = scalar_lea.vmem %s0, %s320
        %p322 = scmp.lt.s32.totalorder %s23, 1
        %s323 = scalar_select %p322, %s23, 1
        %s324 = smul.addr %s323, 2
        %s325 = smul.addr %s324, 8
        %s326 = scalar_lea.vmem %s1, %s325
        %v328 = vld [vmem:[%s321] sm:$0xff]
        %v329 = vld [vmem:[%s321 + $0x8] sm:$0xff]
        %v330 = vld [vmem:[%s321 + $0x10] sm:$0xf]
        %v331 = vpack.c.bf16 %v329, %v328
        %v332 = vld [vmem:[#allocation3] sm:$0xf]
        %v333 = vld [vmem:[#allocation3 + $0x4] sm:$0xf]
        %v334 = vld [vmem:[#allocation3 + $0x8] sm:$0xf]
        %v335 = vld [vmem:[#allocation3 + $0xc] sm:$0xf]
        %v336 = vld [vmem:[#allocation3 + $0x10] sm:$0xf]
        %v337 = vld [vmem:[#allocation3 + $0x14] sm:$0xf]
        %v338 = vld [vmem:[#allocation3 + $0x18] sm:$0xf]
        %v339 = vld [vmem:[#allocation3 + $0x1c] sm:$0xf]
        %v340 = vpack.c.bf16 %v330, %v330
        %s341 = scalar_lea.vmem [#allocation3], 32
        %v342 = vld [vmem:[%s341] sm:$0xf]
        %v343 = vld [vmem:[%s341 + $0x4] sm:$0xf]
        %v344 = vld [vmem:[%s341 + $0x8] sm:$0xf]
        %v345 = vld [vmem:[%s341 + $0xc] sm:$0xf]
        %v346 = vld [vmem:[%s341 + $0x10] sm:$0xf]
        %v347 = vld [vmem:[%s341 + $0x14] sm:$0xf]
        %v348 = vld [vmem:[%s341 + $0x18] sm:$0xf]
        %v349 = vld [vmem:[%s341 + $0x1c] sm:$0xf]
        %vm350 = vsmask.f32 7424
        %v352 = vshrl.u32 %v331, 16
        %v354 = vshll.u32 %v331, 16
        %v356 = vrot.slane %v354, 1
        %v357 = vor.u32 %v352, %v356
        %v359 = vshll.u32 %v340, 16
        %v361 = vrot.slane %v359, 1
        %v362 = vsel %vm350, %v357, %v361
        %v371 = vunpack.c.l.b16 %v342
        %v372 = vunpack.c.l.b16 %v343
        %v373 = vunpack.c.l.b16 %v344
        %v374 = vunpack.c.l.b16 %v345
        %v375 = vunpack.c.l.b16 %v346
        %v376 = vunpack.c.l.b16 %v347
        %v377 = vunpack.c.l.b16 %v348
        %v378 = vunpack.c.l.b16 %v349
        %v379 = vpack.c.b16 %v372, %v371
        %v380 = vpack.c.b16 %v374, %v373
        %v381 = vpack.c.b16 %v376, %v375
        %v382 = vpack.c.b16 %v378, %v377
        %vm387 = vcmask 523264
        %v389 = vsel %vm387, %v362, 0
        %391 = vmatprep.subr.bf16.mxu0 0
        %392 = vmatpush1.bf16.msra.mxu0 %v379
        %393 = vmatprep.subr.bf16.mxu0 0
        %394 = vmatpush1.bf16.msra.mxu0 %v380
        %395 = vmatprep.subr.bf16.mxu0 0
        %396 = vmatpush1.bf16.msra.mxu0 %v381
        %397 = vmatprep.subr.bf16.mxu0 0
        %398 = vmatpush1.bf16.msra.mxu0 %v382
        %399 = vmatprep.subr.bf16.mxu0 0
        %400 = vmatpush1.bf16.msra.mxu0 0
        %401 = vmatprep.subr.bf16.mxu0 0
        %402 = vmatpush1.bf16.msra.mxu0 0
        %403 = vmatprep.subr.bf16.mxu0 0
        %404 = vmatpush1.bf16.msra.mxu0 0
        %405 = vmatprep.subr.bf16.mxu0 0
        %406 = vmatpush1.bf16.msra.mxu0 0
        %407 = vmatprep.subr.bf16.mxu0 0
        %408 = vmatpush1.bf16.msra.mxu0 0
        %409 = vmatprep.subr.bf16.mxu0 0
        %410 = vmatpush1.bf16.msra.mxu0 0
        %411 = vmatprep.subr.bf16.mxu0 0
        %412 = vmatpush1.bf16.msra.mxu0 0
        %413 = vmatprep.subr.bf16.mxu0 0
        %414 = vmatpush1.bf16.msra.mxu0 0
        %415 = vmatprep.subr.bf16.mxu0 0
        %416 = vmatpush1.bf16.msra.mxu0 0
        %417 = vmatprep.subr.bf16.mxu0 0
        %418 = vmatpush1.bf16.msra.mxu0 0
        %419 = vmatprep.subr.bf16.mxu0 0
        %420 = vmatpush1.bf16.msra.mxu0 0
        %421 = vmatprep.subr.bf16.mxu0 0
        %422 = vmatpush1.bf16.msra.mxu0 0
        %423 = vmatprep.mubr.bf16.mxu0 0
        %424 = vmatmul.mubr.bf16.gmra.mrb[0].mxu0 %v389
        %v425 = vpop.f32.mrb[0].mxu0
        %v426 = vadd.f32 0.0, %v425
        %v427 = vpop.f32.mrb[0].mxu0
        %v428 = vpop.f32.mrb[0].mxu0
        %v429 = vadd.f32 0.0, %v428
        %v430 = vpop.f32.mrb[0].mxu0
        %431 = vdwg.mxu0
        %v440 = vunpack.c.l.b16 %v332
        %v441 = vunpack.c.l.b16 %v333
        %v442 = vunpack.c.l.b16 %v334
        %v443 = vunpack.c.l.b16 %v335
        %v444 = vunpack.c.l.b16 %v336
        %v445 = vunpack.c.l.b16 %v337
        %v446 = vunpack.c.l.b16 %v338
        %v447 = vunpack.c.l.b16 %v339
        %v448 = vpack.c.b16 %v441, %v440
        %v449 = vpack.c.b16 %v443, %v442
        %v450 = vpack.c.b16 %v445, %v444
        %v451 = vpack.c.b16 %v447, %v446
        %v456 = vsel %vm387, %v331, 0
        %458 = vmatprep.subr.bf16.mxu0 0
        %459 = vmatpush1.bf16.msra.mxu0 %v448
        %460 = vmatprep.subr.bf16.mxu0 0
        %461 = vmatpush1.bf16.msra.mxu0 %v449
        %462 = vmatprep.subr.bf16.mxu0 0
        %463 = vmatpush1.bf16.msra.mxu0 %v450
        %464 = vmatprep.subr.bf16.mxu0 0
        %465 = vmatpush1.bf16.msra.mxu0 %v451
        %466 = vmatprep.subr.bf16.mxu0 0
        %467 = vmatpush1.bf16.msra.mxu0 0
        %468 = vmatprep.subr.bf16.mxu0 0
        %469 = vmatpush1.bf16.msra.mxu0 0
        %470 = vmatprep.subr.bf16.mxu0 0
        %471 = vmatpush1.bf16.msra.mxu0 0
        %472 = vmatprep.subr.bf16.mxu0 0
        %473 = vmatpush1.bf16.msra.mxu0 0
        %474 = vmatprep.subr.bf16.mxu0 0
        %475 = vmatpush1.bf16.msra.mxu0 0
        %476 = vmatprep.subr.bf16.mxu0 0
        %477 = vmatpush1.bf16.msra.mxu0 0
        %478 = vmatprep.subr.bf16.mxu0 0
        %479 = vmatpush1.bf16.msra.mxu0 0
        %480 = vmatprep.subr.bf16.mxu0 0
        %481 = vmatpush1.bf16.msra.mxu0 0
        %482 = vmatprep.subr.bf16.mxu0 0
        %483 = vmatpush1.bf16.msra.mxu0 0
        %484 = vmatprep.subr.bf16.mxu0 0
        %485 = vmatpush1.bf16.msra.mxu0 0
        %486 = vmatprep.subr.bf16.mxu0 0
        %487 = vmatpush1.bf16.msra.mxu0 0
        %488 = vmatprep.subr.bf16.mxu0 0
        %489 = vmatpush1.bf16.msra.mxu0 0
        %490 = vmatprep.mubr.bf16.mxu0 0
        %491 = vmatmul.mubr.bf16.gmra.mrb[0].mxu0 %v456
        %v492 = vpop.f32.mrb[0].mxu0
        %v493 = vadd.f32 %v426, %v492
        %v494 = vpop.f32.mrb[0].mxu0
        %v495 = vpop.f32.mrb[0].mxu0
        %v496 = vadd.f32 %v429, %v495
        %v497 = vpop.f32.mrb[0].mxu0
        %498 = vdwg.mxu0
        %s499 = scalar_lea.vmem [#allocation3], 64
        %v500 = vld [vmem:[%s499] sm:$0xf]
        %v501 = vld [vmem:[%s499 + $0x4] sm:$0xf]
        %v502 = vld [vmem:[%s499 + $0x8] sm:$0xf]
        %v503 = vld [vmem:[%s499 + $0xc] sm:$0xf]
        %v504 = vld [vmem:[%s499 + $0x10] sm:$0xf]
        %v505 = vld [vmem:[%s499 + $0x14] sm:$0xf]
        %v506 = vld [vmem:[%s499 + $0x18] sm:$0xf]
        %v507 = vld [vmem:[%s499 + $0x1c] sm:$0xf]
        %vm510 = vcmask 1046528
        %v511 = vrot.slane %v331, 1
        %v512 = vrot.slane %v340, 1
        %v513 = vsel %vm510, %v511, %v512
        %v522 = vunpack.c.l.b16 %v500
        %v523 = vunpack.c.l.b16 %v501
        %v524 = vunpack.c.l.b16 %v502
        %v525 = vunpack.c.l.b16 %v503
        %v526 = vunpack.c.l.b16 %v504
        %v527 = vunpack.c.l.b16 %v505
        %v528 = vunpack.c.l.b16 %v506
        %v529 = vunpack.c.l.b16 %v507
        %v530 = vpack.c.b16 %v523, %v522
        %v531 = vpack.c.b16 %v525, %v524
        %v532 = vpack.c.b16 %v527, %v526
        %v533 = vpack.c.b16 %v529, %v528
        %v539 = vsel %vm387, %v513, 0
        %541 = vmatprep.subr.bf16.mxu0 0
        %542 = vmatpush1.bf16.msra.mxu0 %v530
        %543 = vmatprep.subr.bf16.mxu0 0
        %544 = vmatpush1.bf16.msra.mxu0 %v531
        %545 = vmatprep.subr.bf16.mxu0 0
        %546 = vmatpush1.bf16.msra.mxu0 %v532
        %547 = vmatprep.subr.bf16.mxu0 0
        %548 = vmatpush1.bf16.msra.mxu0 %v533
        %549 = vmatprep.subr.bf16.mxu0 0
        %550 = vmatpush1.bf16.msra.mxu0 0
        %551 = vmatprep.subr.bf16.mxu0 0
        %552 = vmatpush1.bf16.msra.mxu0 0
        %553 = vmatprep.subr.bf16.mxu0 0
        %554 = vmatpush1.bf16.msra.mxu0 0
        %555 = vmatprep.subr.bf16.mxu0 0
        %556 = vmatpush1.bf16.msra.mxu0 0
        %557 = vmatprep.subr.bf16.mxu0 0
        %558 = vmatpush1.bf16.msra.mxu0 0
        %559 = vmatprep.subr.bf16.mxu0 0
        %560 = vmatpush1.bf16.msra.mxu0 0
        %561 = vmatprep.subr.bf16.mxu0 0
        %562 = vmatpush1.bf16.msra.mxu0 0
        %563 = vmatprep.subr.bf16.mxu0 0
        %564 = vmatpush1.bf16.msra.mxu0 0
        %565 = vmatprep.subr.bf16.mxu0 0
        %566 = vmatpush1.bf16.msra.mxu0 0
        %567 = vmatprep.subr.bf16.mxu0 0
        %568 = vmatpush1.bf16.msra.mxu0 0
        %569 = vmatprep.subr.bf16.mxu0 0
        %570 = vmatpush1.bf16.msra.mxu0 0
        %571 = vmatprep.subr.bf16.mxu0 0
        %572 = vmatpush1.bf16.msra.mxu0 0
        %573 = vmatprep.mubr.bf16.mxu0 0
        %574 = vmatmul.mubr.bf16.gmra.mrb[0].mxu0 %v539
        %v575 = vpop.f32.mrb[0].mxu0
        %v576 = vadd.f32 0.0, %v575
        %v577 = vpop.f32.mrb[0].mxu0
        %v578 = vpop.f32.mrb[0].mxu0
        %v579 = vadd.f32 0.0, %v578
        %v580 = vpop.f32.mrb[0].mxu0
        %581 = vdwg.mxu0
        %v582 = vadd.f32 %v493, %v576
        %v583 = vadd.f32 %v496, %v579
        %s584 = scalar_lea.vmem [#allocation3], 96
        %v585 = vld [vmem:[%s584] sm:$0xf]
        %v586 = vld [vmem:[%s584 + $0x4] sm:$0xf]
        %v587 = vld [vmem:[%s584 + $0x8] sm:$0xf]
        %v588 = vld [vmem:[%s584 + $0xc] sm:$0xf]
        %v589 = vld [vmem:[%s584 + $0x10] sm:$0xf]
        %v590 = vld [vmem:[%s584 + $0x14] sm:$0xf]
        %v591 = vld [vmem:[%s584 + $0x18] sm:$0xf]
        %v592 = vld [vmem:[%s584 + $0x1c] sm:$0xf]
        %vm593 = vsmask.f32 6400
        %v594 = vrot.slane %v352, 1
        %v595 = vrot.slane %v354, 2
        %v596 = vor.u32 %v594, %v595
        %v597 = vshrl.u32 %v340, 16
        %v599 = vrot.slane %v597, 1
        %v600 = vrot.slane %v359, 2
        %v601 = vor.u32 %v599, %v600
        %v602 = vsel %vm593, %v596, %v601
        %v611 = vunpack.c.l.b16 %v585
        %v612 = vunpack.c.l.b16 %v586
        %v613 = vunpack.c.l.b16 %v587
        %v614 = vunpack.c.l.b16 %v588
        %v615 = vunpack.c.l.b16 %v589
        %v616 = vunpack.c.l.b16 %v590
        %v617 = vunpack.c.l.b16 %v591
        %v618 = vunpack.c.l.b16 %v592
        %v619 = vpack.c.b16 %v612, %v611
        %v620 = vpack.c.b16 %v614, %v613
        %v621 = vpack.c.b16 %v616, %v615
        %v622 = vpack.c.b16 %v618, %v617
        %v628 = vsel %vm387, %v602, 0
        %630 = vmatprep.subr.bf16.mxu0 0
        %631 = vmatpush1.bf16.msra.mxu0 %v619
        %632 = vmatprep.subr.bf16.mxu0 0
        %633 = vmatpush1.bf16.msra.mxu0 %v620
        %634 = vmatprep.subr.bf16.mxu0 0
        %635 = vmatpush1.bf16.msra.mxu0 %v621
        %636 = vmatprep.subr.bf16.mxu0 0
        %637 = vmatpush1.bf16.msra.mxu0 %v622
        %638 = vmatprep.subr.bf16.mxu0 0
        %639 = vmatpush1.bf16.msra.mxu0 0
        %640 = vmatprep.subr.bf16.mxu0 0
        %641 = vmatpush1.bf16.msra.mxu0 0
        %642 = vmatprep.subr.bf16.mxu0 0
        %643 = vmatpush1.bf16.msra.mxu0 0
        %644 = vmatprep.subr.bf16.mxu0 0
        %645 = vmatpush1.bf16.msra.mxu0 0
        %646 = vmatprep.subr.bf16.mxu0 0
        %647 = vmatpush1.bf16.msra.mxu0 0
        %648 = vmatprep.subr.bf16.mxu0 0
        %649 = vmatpush1.bf16.msra.mxu0 0
        %650 = vmatprep.subr.bf16.mxu0 0
        %651 = vmatpush1.bf16.msra.mxu0 0
        %652 = vmatprep.subr.bf16.mxu0 0
        %653 = vmatpush1.bf16.msra.mxu0 0
        %654 = vmatprep.subr.bf16.mxu0 0
        %655 = vmatpush1.bf16.msra.mxu0 0
        %656 = vmatprep.subr.bf16.mxu0 0
        %657 = vmatpush1.bf16.msra.mxu0 0
        %658 = vmatprep.subr.bf16.mxu0 0
        %659 = vmatpush1.bf16.msra.mxu0 0
        %660 = vmatprep.subr.bf16.mxu0 0
        %661 = vmatpush1.bf16.msra.mxu0 0
        %662 = vmatprep.mubr.bf16.mxu0 0
        %663 = vmatmul.mubr.bf16.gmra.mrb[0].mxu0 %v628
        %v664 = vpop.f32.mrb[0].mxu0
        %v665 = vadd.f32 0.0, %v664
        %v666 = vpop.f32.mrb[0].mxu0
        %v667 = vpop.f32.mrb[0].mxu0
        %v668 = vadd.f32 0.0, %v667
        %v669 = vpop.f32.mrb[0].mxu0
        %670 = vdwg.mxu0
        %v671 = vadd.f32 %v582, %v665
        %v672 = vadd.f32 %v583, %v668
        %s673 = scalar_lea.vmem [#allocation3], 128
        %v674 = vld [vmem:[%s673] sm:$0xf]
        %v675 = vld [vmem:[%s673 + $0x4] sm:$0xf]
        %v676 = vld [vmem:[%s673 + $0x8] sm:$0xf]
        %v677 = vld [vmem:[%s673 + $0xc] sm:$0xf]
        %v678 = vld [vmem:[%s673 + $0x10] sm:$0xf]
        %v679 = vld [vmem:[%s673 + $0x14] sm:$0xf]
        %v680 = vld [vmem:[%s673 + $0x18] sm:$0xf]
        %v681 = vld [vmem:[%s673 + $0x1c] sm:$0xf]
        %vm682 = vcmask 1045504
        %v683 = vrot.slane %v331, 2
        %v684 = vrot.slane %v340, 2
        %v685 = vsel %vm682, %v683, %v684
        %v694 = vunpack.c.l.b16 %v674
        %v695 = vunpack.c.l.b16 %v675
        %v696 = vunpack.c.l.b16 %v676
        %v697 = vunpack.c.l.b16 %v677
        %v698 = vunpack.c.l.b16 %v678
        %v699 = vunpack.c.l.b16 %v679
        %v700 = vunpack.c.l.b16 %v680
        %v701 = vunpack.c.l.b16 %v681
        %v702 = vpack.c.b16 %v695, %v694
        %v703 = vpack.c.b16 %v697, %v696
        %v704 = vpack.c.b16 %v699, %v698
        %v705 = vpack.c.b16 %v701, %v700
        %v711 = vsel %vm387, %v685, 0
        %713 = vmatprep.subr.bf16.mxu0 0
        %714 = vmatpush1.bf16.msra.mxu0 %v702
        %715 = vmatprep.subr.bf16.mxu0 0
        %716 = vmatpush1.bf16.msra.mxu0 %v703
        %717 = vmatprep.subr.bf16.mxu0 0
        %718 = vmatpush1.bf16.msra.mxu0 %v704
        %719 = vmatprep.subr.bf16.mxu0 0
        %720 = vmatpush1.bf16.msra.mxu0 %v705
        %721 = vmatprep.subr.bf16.mxu0 0
        %722 = vmatpush1.bf16.msra.mxu0 0
        %723 = vmatprep.subr.bf16.mxu0 0
        %724 = vmatpush1.bf16.msra.mxu0 0
        %725 = vmatprep.subr.bf16.mxu0 0
        %726 = vmatpush1.bf16.msra.mxu0 0
        %727 = vmatprep.subr.bf16.mxu0 0
        %728 = vmatpush1.bf16.msra.mxu0 0
        %729 = vmatprep.subr.bf16.mxu0 0
        %730 = vmatpush1.bf16.msra.mxu0 0
        %731 = vmatprep.subr.bf16.mxu0 0
        %732 = vmatpush1.bf16.msra.mxu0 0
        %733 = vmatprep.subr.bf16.mxu0 0
        %734 = vmatpush1.bf16.msra.mxu0 0
        %735 = vmatprep.subr.bf16.mxu0 0
        %736 = vmatpush1.bf16.msra.mxu0 0
        %737 = vmatprep.subr.bf16.mxu0 0
        %738 = vmatpush1.bf16.msra.mxu0 0
        %739 = vmatprep.subr.bf16.mxu0 0
        %740 = vmatpush1.bf16.msra.mxu0 0
        %741 = vmatprep.subr.bf16.mxu0 0
        %742 = vmatpush1.bf16.msra.mxu0 0
        %743 = vmatprep.subr.bf16.mxu0 0
        %744 = vmatpush1.bf16.msra.mxu0 0
        %745 = vmatprep.mubr.bf16.mxu0 0
        %746 = vmatmul.mubr.bf16.gmra.mrb[0].mxu0 %v711
        %v747 = vpop.f32.mrb[0].mxu0
        %v748 = vadd.f32 0.0, %v747
        %v749 = vpop.f32.mrb[0].mxu0
        %v750 = vpop.f32.mrb[0].mxu0
        %v751 = vadd.f32 0.0, %v750
        %v752 = vpop.f32.mrb[0].mxu0
        %753 = vdwg.mxu0
        %v754 = vadd.f32 %v671, %v748
        %v755 = vadd.f32 %v672, %v751
        %v756 = vld [vmem:[%s3] sm:$0x1]
        %v758 = vlaneseq
        %v759 = vshrl.u32 %v758, 7
        %v760 = vsub.s32 0, %v759
        %v761 = vrot.slane %v756, %v760
        %v763 = vadd.f32 %v754, %v761
        %v764 = vadd.f32 %v755, %v761
        %v765 = vmax.f32 %v763, 0.0
        %v766 = vmax.f32 %v764, 0.0
        %vm767 = vcmask 517120
        %768 = vst.msk [vmem:[#allocation2] sm:$0x3] %vm767, 0.0
        %769 = vst.msk [vmem:[#allocation2 + $0x12] sm:$0x3] %vm767, 0.0
        %770 = vst.msk [vmem:[#allocation2 + $0x2] sm:$0xff] %vm387, %v765
        %771 = vst.msk [vmem:[#allocation2 + $0xa] sm:$0xff] %vm387, %v766
        %v772 = vld [vmem:[%s326] sm:$0xff]
        %v773 = vld [vmem:[%s326 + $0x8] sm:$0xff]
        %v774 = vld [vmem:[%s5] sm:$0xff]
        %v775 = vld [vmem:[%s5 + $0x8] sm:$0xff]
        %v776 = vld [vmem:[%s5 + $0x10] sm:$0xff]
        %v777 = vld [vmem:[%s5 + $0x18] sm:$0xff]
        %v778 = vld [vmem:[%s5 + $0x20] sm:$0xff]
        %v779 = vld [vmem:[%s5 + $0x28] sm:$0xff]
        %v780 = vld [vmem:[%s5 + $0x30] sm:$0xff]
        %v781 = vld [vmem:[%s5 + $0x38] sm:$0xff]
        %v782 = vld [vmem:[#allocation2] sm:$0xff]
        %v783 = vld [vmem:[#allocation2 + $0x8] sm:$0xff]
        %v784 = vpack.c.bf16 %v783, %v782
        %v785 = vld [vmem:[#allocation6] sm:$0xf]
        %v786 = vld [vmem:[#allocation6 + $0x4] sm:$0xf]
        %v787 = vld [vmem:[#allocation6 + $0x8] sm:$0xf]
        %v788 = vld [vmem:[#allocation6 + $0xc] sm:$0xf]
        %v789 = vld [vmem:[#allocation6 + $0x10] sm:$0xf]
        %v790 = vld [vmem:[#allocation6 + $0x14] sm:$0xf]
        %v791 = vld [vmem:[#allocation6 + $0x18] sm:$0xf]
        %v792 = vld [vmem:[#allocation6 + $0x1c] sm:$0xf]
        %v801 = vunpack.c.l.b16 %v785
        %v802 = vunpack.c.l.b16 %v786
        %v803 = vunpack.c.l.b16 %v787
        %v804 = vunpack.c.l.b16 %v788
        %v805 = vunpack.c.l.b16 %v789
        %v806 = vunpack.c.l.b16 %v790
        %v807 = vunpack.c.l.b16 %v791
        %v808 = vunpack.c.l.b16 %v792
        %v809 = vpack.c.b16 %v802, %v801
        %v810 = vpack.c.b16 %v804, %v803
        %v811 = vpack.c.b16 %v806, %v805
        %v812 = vpack.c.b16 %v808, %v807
        %v818 = vsel %vm387, %v784, 0
        %820 = vmatprep.subr.bf16.mxu0 0
        %821 = vmatpush1.bf16.msra.mxu0 %v809
        %822 = vmatprep.subr.bf16.mxu0 0
        %823 = vmatpush1.bf16.msra.mxu0 %v810
        %824 = vmatprep.subr.bf16.mxu0 0
        %825 = vmatpush1.bf16.msra.mxu0 %v811
        %826 = vmatprep.subr.bf16.mxu0 0
        %827 = vmatpush1.bf16.msra.mxu0 %v812
        %828 = vmatprep.subr.bf16.mxu0 0
        %829 = vmatpush1.bf16.msra.mxu0 0
        %830 = vmatprep.subr.bf16.mxu0 0
        %831 = vmatpush1.bf16.msra.mxu0 0
        %832 = vmatprep.subr.bf16.mxu0 0
        %833 = vmatpush1.bf16.msra.mxu0 0
        %834 = vmatprep.subr.bf16.mxu0 0
        %835 = vmatpush1.bf16.msra.mxu0 0
        %836 = vmatprep.subr.bf16.mxu0 0
        %837 = vmatpush1.bf16.msra.mxu0 0
        %838 = vmatprep.subr.bf16.mxu0 0
        %839 = vmatpush1.bf16.msra.mxu0 0
        %840 = vmatprep.subr.bf16.mxu0 0
        %841 = vmatpush1.bf16.msra.mxu0 0
        %842 = vmatprep.subr.bf16.mxu0 0
        %843 = vmatpush1.bf16.msra.mxu0 0
        %844 = vmatprep.subr.bf16.mxu0 0
        %845 = vmatpush1.bf16.msra.mxu0 0
        %846 = vmatprep.subr.bf16.mxu0 0
        %847 = vmatpush1.bf16.msra.mxu0 0
        %848 = vmatprep.subr.bf16.mxu0 0
        %849 = vmatpush1.bf16.msra.mxu0 0
        %850 = vmatprep.subr.bf16.mxu0 0
        %851 = vmatpush1.bf16.msra.mxu0 0
        %852 = vmatprep.mubr.bf16.mxu0 0
        %853 = vmatmul.mubr.bf16.gmra.mrb[0].mxu0 %v818
        %v854 = vpop.f32.mrb[0].mxu0
        %v855 = vadd.f32 0.0, %v854
        %v856 = vpop.f32.mrb[0].mxu0
        %v857 = vpop.f32.mrb[0].mxu0
        %v858 = vadd.f32 0.0, %v857
        %v859 = vpop.f32.mrb[0].mxu0
        %860 = vdwg.mxu0
        %v862 = vsel %vm387, %v772, 0
        %v865 = vsel %vm387, %v773, 0
        %867 = vmatprep.subr.mxu0 0.0
        %868 = vmatpush1.msra.mxu0 %v774
        %869 = vmatprep.subr.mxu0 0.0
        %870 = vmatpush1.msra.mxu0 %v775
        %871 = vmatprep.subr.mxu0 0.0
        %872 = vmatpush1.msra.mxu0 %v776
        %873 = vmatprep.subr.mxu0 0.0
        %874 = vmatpush1.msra.mxu0 %v777
        %875 = vmatprep.subr.mxu0 0.0
        %876 = vmatpush1.msra.mxu0 %v778
        %877 = vmatprep.subr.mxu0 0.0
        %878 = vmatpush1.msra.mxu0 %v779
        %879 = vmatprep.subr.mxu0 0.0
        %880 = vmatpush1.msra.mxu0 %v780
        %881 = vmatprep.subr.mxu0 0.0
        %882 = vmatpush1.msra.mxu0 %v781
        %883 = vmatprep.subr.mxu0 0.0
        %884 = vmatpush1.msra.mxu0 0.0
        %885 = vmatprep.subr.mxu0 0.0
        %886 = vmatpush1.msra.mxu0 0.0
        %887 = vmatprep.subr.mxu0 0.0
        %888 = vmatpush1.msra.mxu0 0.0
        %889 = vmatprep.subr.mxu0 0.0
        %890 = vmatpush1.msra.mxu0 0.0
        %891 = vmatprep.subr.mxu0 0.0
        %892 = vmatpush1.msra.mxu0 0.0
        %893 = vmatprep.subr.mxu0 0.0
        %894 = vmatpush1.msra.mxu0 0.0
        %895 = vmatprep.subr.mxu0 0.0
        %896 = vmatpush1.msra.mxu0 0.0
        %897 = vmatprep.subr.mxu0 0.0
        %898 = vmatpush1.msra.mxu0 0.0
        %899 = vmatprep.subr.mxu0 0.0
        %900 = vmatpush1.msra.mxu0 0.0
        %901 = vmatprep.subr.mxu0 0.0
        %902 = vmatpush1.msra.mxu0 0.0
        %903 = vmatprep.subr.mxu0 0.0
        %904 = vmatpush1.msra.mxu0 0.0
        %905 = vmatprep.subr.mxu0 0.0
        %906 = vmatpush1.msra.mxu0 0.0
        %907 = vmatprep.subr.mxu0 0.0
        %908 = vmatpush1.msra.mxu0 0.0
        %909 = vmatprep.subr.mxu0 0.0
        %910 = vmatpush1.msra.mxu0 0.0
        %911 = vmatprep.subr.mxu0 0.0
        %912 = vmatpush1.msra.mxu0 0.0
        %913 = vmatprep.subr.mxu0 0.0
        %914 = vmatpush1.msra.mxu0 0.0
        %915 = vmatprep.subr.mxu0 0.0
        %916 = vmatpush1.msra.mxu0 0.0
        %917 = vmatprep.subr.mxu0 0.0
        %918 = vmatpush1.msra.mxu0 0.0
        %919 = vmatprep.subr.mxu0 0.0
        %920 = vmatpush1.msra.mxu0 0.0
        %921 = vmatprep.subr.mxu0 0.0
        %922 = vmatpush1.msra.mxu0 0.0
        %923 = vmatprep.subr.mxu0 0.0
        %924 = vmatpush1.msra.mxu0 0.0
        %925 = vmatprep.subr.mxu0 0.0
        %926 = vmatpush1.msra.mxu0 0.0
        %927 = vmatprep.subr.mxu0 0.0
        %928 = vmatpush1.msra.mxu0 0.0
        %929 = vmatprep.subr.mxu0 0.0
        %930 = vmatpush1.msra.mxu0 0.0
        %931 = vmatprep.mubr.f32.mxu0 0.0
        %932 = vmatmul.mubr.f32.gmra.mrb[0].mxu0 %v862
        %v933 = vpop.f32.mrb[0].mxu0
        %v934 = vadd.f32 %v855, %v933
        %v935 = vpop.f32.mrb[0].mxu0
        %936 = vmatprep.mubr.f32.mxu0 0.0
        %937 = vmatmul.mubr.f32.gmra.mrb[0].mxu0 %v865
        %v938 = vpop.f32.mrb[0].mxu0
        %v939 = vadd.f32 %v858, %v938
        %v940 = vpop.f32.mrb[0].mxu0
        %941 = vdwg.mxu0
        %v942 = vld [vmem:[#allocation2 + $0x1] sm:$0xff]
        %v943 = vld [vmem:[#allocation2 + $0x9] sm:$0xff]
        %v944 = vpack.c.bf16 %v943, %v942
        %s945 = scalar_lea.vmem [#allocation6], 32
        %v946 = vld [vmem:[%s945] sm:$0xf]
        %v947 = vld [vmem:[%s945 + $0x4] sm:$0xf]
        %v948 = vld [vmem:[%s945 + $0x8] sm:$0xf]
        %v949 = vld [vmem:[%s945 + $0xc] sm:$0xf]
        %v950 = vld [vmem:[%s945 + $0x10] sm:$0xf]
        %v951 = vld [vmem:[%s945 + $0x14] sm:$0xf]
        %v952 = vld [vmem:[%s945 + $0x18] sm:$0xf]
        %v953 = vld [vmem:[%s945 + $0x1c] sm:$0xf]
        %v962 = vunpack.c.l.b16 %v946
        %v963 = vunpack.c.l.b16 %v947
        %v964 = vunpack.c.l.b16 %v948
        %v965 = vunpack.c.l.b16 %v949
        %v966 = vunpack.c.l.b16 %v950
        %v967 = vunpack.c.l.b16 %v951
        %v968 = vunpack.c.l.b16 %v952
        %v969 = vunpack.c.l.b16 %v953
        %v970 = vpack.c.b16 %v963, %v962
        %v971 = vpack.c.b16 %v965, %v964
        %v972 = vpack.c.b16 %v967, %v966
        %v973 = vpack.c.b16 %v969, %v968
        %v979 = vsel %vm387, %v944, 0
        %981 = vmatprep.subr.bf16.mxu0 0
        %982 = vmatpush1.bf16.msra.mxu0 %v970
        %983 = vmatprep.subr.bf16.mxu0 0
        %984 = vmatpush1.bf16.msra.mxu0 %v971
        %985 = vmatprep.subr.bf16.mxu0 0
        %986 = vmatpush1.bf16.msra.mxu0 %v972
        %987 = vmatprep.subr.bf16.mxu0 0
        %988 = vmatpush1.bf16.msra.mxu0 %v973
        %989 = vmatprep.subr.bf16.mxu0 0
        %990 = vmatpush1.bf16.msra.mxu0 0
        %991 = vmatprep.subr.bf16.mxu0 0
        %992 = vmatpush1.bf16.msra.mxu0 0
        %993 = vmatprep.subr.bf16.mxu0 0
        %994 = vmatpush1.bf16.msra.mxu0 0
        %995 = vmatprep.subr.bf16.mxu0 0
        %996 = vmatpush1.bf16.msra.mxu0 0
        %997 = vmatprep.subr.bf16.mxu0 0
        %998 = vmatpush1.bf16.msra.mxu0 0
        %999 = vmatprep.subr.bf16.mxu0 0
        %1000 = vmatpush1.bf16.msra.mxu0 0
        %1001 = vmatprep.subr.bf16.mxu0 0
        %1002 = vmatpush1.bf16.msra.mxu0 0
        %1003 = vmatprep.subr.bf16.mxu0 0
        %1004 = vmatpush1.bf16.msra.mxu0 0
        %1005 = vmatprep.subr.bf16.mxu0 0
        %1006 = vmatpush1.bf16.msra.mxu0 0
        %1007 = vmatprep.subr.bf16.mxu0 0
        %1008 = vmatpush1.bf16.msra.mxu0 0
        %1009 = vmatprep.subr.bf16.mxu0 0
        %1010 = vmatpush1.bf16.msra.mxu0 0
        %1011 = vmatprep.subr.bf16.mxu0 0
        %1012 = vmatpush1.bf16.msra.mxu0 0
        %1013 = vmatprep.mubr.bf16.mxu0 0
        %1014 = vmatmul.mubr.bf16.gmra.mrb[0].mxu0 %v979
        %v1015 = vpop.f32.mrb[0].mxu0
        %v1016 = vadd.f32 0.0, %v1015
        %v1017 = vpop.f32.mrb[0].mxu0
        %v1018 = vpop.f32.mrb[0].mxu0
        %v1019 = vadd.f32 0.0, %v1018
        %v1020 = vpop.f32.mrb[0].mxu0
        %1021 = vdwg.mxu0
        %v1022 = vadd.f32 %v934, %v1016
        %v1023 = vadd.f32 %v939, %v1019
        %v1024 = vld [vmem:[#allocation2 + $0x2] sm:$0xff]
        %v1025 = vld [vmem:[#allocation2 + $0xa] sm:$0xff]
        %v1026 = vpack.c.bf16 %v1025, %v1024
        %s1027 = scalar_lea.vmem [#allocation6], 64
        %v1028 = vld [vmem:[%s1027] sm:$0xf]
        %v1029 = vld [vmem:[%s1027 + $0x4] sm:$0xf]
        %v1030 = vld [vmem:[%s1027 + $0x8] sm:$0xf]
        %v1031 = vld [vmem:[%s1027 + $0xc] sm:$0xf]
        %v1032 = vld [vmem:[%s1027 + $0x10] sm:$0xf]
        %v1033 = vld [vmem:[%s1027 + $0x14] sm:$0xf]
        %v1034 = vld [vmem:[%s1027 + $0x18] sm:$0xf]
        %v1035 = vld [vmem:[%s1027 + $0x1c] sm:$0xf]
        %v1044 = vunpack.c.l.b16 %v1028
        %v1045 = vunpack.c.l.b16 %v1029
        %v1046 = vunpack.c.l.b16 %v1030
        %v1047 = vunpack.c.l.b16 %v1031
        %v1048 = vunpack.c.l.b16 %v1032
        %v1049 = vunpack.c.l.b16 %v1033
        %v1050 = vunpack.c.l.b16 %v1034
        %v1051 = vunpack.c.l.b16 %v1035
        %v1052 = vpack.c.b16 %v1045, %v1044
        %v1053 = vpack.c.b16 %v1047, %v1046
        %v1054 = vpack.c.b16 %v1049, %v1048
        %v1055 = vpack.c.b16 %v1051, %v1050
        %v1061 = vsel %vm387, %v1026, 0
        %1063 = vmatprep.subr.bf16.mxu0 0
        %1064 = vmatpush1.bf16.msra.mxu0 %v1052
        %1065 = vmatprep.subr.bf16.mxu0 0
        %1066 = vmatpush1.bf16.msra.mxu0 %v1053
        %1067 = vmatprep.subr.bf16.mxu0 0
        %1068 = vmatpush1.bf16.msra.mxu0 %v1054
        %1069 = vmatprep.subr.bf16.mxu0 0
        %1070 = vmatpush1.bf16.msra.mxu0 %v1055
        %1071 = vmatprep.subr.bf16.mxu0 0
        %1072 = vmatpush1.bf16.msra.mxu0 0
        %1073 = vmatprep.subr.bf16.mxu0 0
        %1074 = vmatpush1.bf16.msra.mxu0 0
        %1075 = vmatprep.subr.bf16.mxu0 0
        %1076 = vmatpush1.bf16.msra.mxu0 0
        %1077 = vmatprep.subr.bf16.mxu0 0
        %1078 = vmatpush1.bf16.msra.mxu0 0
        %1079 = vmatprep.subr.bf16.mxu0 0
        %1080 = vmatpush1.bf16.msra.mxu0 0
        %1081 = vmatprep.subr.bf16.mxu0 0
        %1082 = vmatpush1.bf16.msra.mxu0 0
        %1083 = vmatprep.subr.bf16.mxu0 0
        %1084 = vmatpush1.bf16.msra.mxu0 0
        %1085 = vmatprep.subr.bf16.mxu0 0
        %1086 = vmatpush1.bf16.msra.mxu0 0
        %1087 = vmatprep.subr.bf16.mxu0 0
        %1088 = vmatpush1.bf16.msra.mxu0 0
        %1089 = vmatprep.subr.bf16.mxu0 0
        %1090 = vmatpush1.bf16.msra.mxu0 0
        %1091 = vmatprep.subr.bf16.mxu0 0
        %1092 = vmatpush1.bf16.msra.mxu0 0
        %1093 = vmatprep.subr.bf16.mxu0 0
        %1094 = vmatpush1.bf16.msra.mxu0 0
        %1095 = vmatprep.mubr.bf16.mxu0 0
        %1096 = vmatmul.mubr.bf16.gmra.mrb[0].mxu0 %v1061
        %v1097 = vpop.f32.mrb[0].mxu0
        %v1098 = vadd.f32 0.0, %v1097
        %v1099 = vpop.f32.mrb[0].mxu0
        %v1100 = vpop.f32.mrb[0].mxu0
        %v1101 = vadd.f32 0.0, %v1100
        %v1102 = vpop.f32.mrb[0].mxu0
        %1103 = vdwg.mxu0
        %v1104 = vadd.f32 %v1022, %v1098
        %v1105 = vadd.f32 %v1023, %v1101
        %v1106 = vld [vmem:[#allocation2 + $0x3] sm:$0xff]
        %v1107 = vld [vmem:[#allocation2 + $0xb] sm:$0xff]
        %v1108 = vpack.c.bf16 %v1107, %v1106
        %s1109 = scalar_lea.vmem [#allocation6], 96
        %v1110 = vld [vmem:[%s1109] sm:$0xf]
        %v1111 = vld [vmem:[%s1109 + $0x4] sm:$0xf]
        %v1112 = vld [vmem:[%s1109 + $0x8] sm:$0xf]
        %v1113 = vld [vmem:[%s1109 + $0xc] sm:$0xf]
        %v1114 = vld [vmem:[%s1109 + $0x10] sm:$0xf]
        %v1115 = vld [vmem:[%s1109 + $0x14] sm:$0xf]
        %v1116 = vld [vmem:[%s1109 + $0x18] sm:$0xf]
        %v1117 = vld [vmem:[%s1109 + $0x1c] sm:$0xf]
        %v1126 = vunpack.c.l.b16 %v1110
        %v1127 = vunpack.c.l.b16 %v1111
        %v1128 = vunpack.c.l.b16 %v1112
        %v1129 = vunpack.c.l.b16 %v1113
        %v1130 = vunpack.c.l.b16 %v1114
        %v1131 = vunpack.c.l.b16 %v1115
        %v1132 = vunpack.c.l.b16 %v1116
        %v1133 = vunpack.c.l.b16 %v1117
        %v1134 = vpack.c.b16 %v1127, %v1126
        %v1135 = vpack.c.b16 %v1129, %v1128
        %v1136 = vpack.c.b16 %v1131, %v1130
        %v1137 = vpack.c.b16 %v1133, %v1132
        %v1143 = vsel %vm387, %v1108, 0
        %1145 = vmatprep.subr.bf16.mxu0 0
        %1146 = vmatpush1.bf16.msra.mxu0 %v1134
        %1147 = vmatprep.subr.bf16.mxu0 0
        %1148 = vmatpush1.bf16.msra.mxu0 %v1135
        %1149 = vmatprep.subr.bf16.mxu0 0
        %1150 = vmatpush1.bf16.msra.mxu0 %v1136
        %1151 = vmatprep.subr.bf16.mxu0 0
        %1152 = vmatpush1.bf16.msra.mxu0 %v1137
        %1153 = vmatprep.subr.bf16.mxu0 0
        %1154 = vmatpush1.bf16.msra.mxu0 0
        %1155 = vmatprep.subr.bf16.mxu0 0
        %1156 = vmatpush1.bf16.msra.mxu0 0
        %1157 = vmatprep.subr.bf16.mxu0 0
        %1158 = vmatpush1.bf16.msra.mxu0 0
        %1159 = vmatprep.subr.bf16.mxu0 0
        %1160 = vmatpush1.bf16.msra.mxu0 0
        %1161 = vmatprep.subr.bf16.mxu0 0
        %1162 = vmatpush1.bf16.msra.mxu0 0
        %1163 = vmatprep.subr.bf16.mxu0 0
        %1164 = vmatpush1.bf16.msra.mxu0 0
        %1165 = vmatprep.subr.bf16.mxu0 0
        %1166 = vmatpush1.bf16.msra.mxu0 0
        %1167 = vmatprep.subr.bf16.mxu0 0
        %1168 = vmatpush1.bf16.msra.mxu0 0
        %1169 = vmatprep.subr.bf16.mxu0 0
        %1170 = vmatpush1.bf16.msra.mxu0 0
        %1171 = vmatprep.subr.bf16.mxu0 0
        %1172 = vmatpush1.bf16.msra.mxu0 0
        %1173 = vmatprep.subr.bf16.mxu0 0
        %1174 = vmatpush1.bf16.msra.mxu0 0
        %1175 = vmatprep.subr.bf16.mxu0 0
        %1176 = vmatpush1.bf16.msra.mxu0 0
        %1177 = vmatprep.mubr.bf16.mxu0 0
        %1178 = vmatmul.mubr.bf16.gmra.mrb[0].mxu0 %v1143
        %v1179 = vpop.f32.mrb[0].mxu0
        %v1180 = vadd.f32 0.0, %v1179
        %v1181 = vpop.f32.mrb[0].mxu0
        %v1182 = vpop.f32.mrb[0].mxu0
        %v1183 = vadd.f32 0.0, %v1182
        %v1184 = vpop.f32.mrb[0].mxu0
        %1185 = vdwg.mxu0
        %v1186 = vadd.f32 %v1104, %v1180
        %v1187 = vadd.f32 %v1105, %v1183
        %v1188 = vld [vmem:[#allocation2 + $0x4] sm:$0xff]
        %v1189 = vld [vmem:[#allocation2 + $0xc] sm:$0xff]
        %v1190 = vpack.c.bf16 %v1189, %v1188
        %s1191 = scalar_lea.vmem [#allocation6], 128
        %v1192 = vld [vmem:[%s1191] sm:$0xf]
        %v1193 = vld [vmem:[%s1191 + $0x4] sm:$0xf]
        %v1194 = vld [vmem:[%s1191 + $0x8] sm:$0xf]
        %v1195 = vld [vmem:[%s1191 + $0xc] sm:$0xf]
        %v1196 = vld [vmem:[%s1191 + $0x10] sm:$0xf]
        %v1197 = vld [vmem:[%s1191 + $0x14] sm:$0xf]
        %v1198 = vld [vmem:[%s1191 + $0x18] sm:$0xf]
        %v1199 = vld [vmem:[%s1191 + $0x1c] sm:$0xf]
        %v1208 = vunpack.c.l.b16 %v1192
        %v1209 = vunpack.c.l.b16 %v1193
        %v1210 = vunpack.c.l.b16 %v1194
        %v1211 = vunpack.c.l.b16 %v1195
        %v1212 = vunpack.c.l.b16 %v1196
        %v1213 = vunpack.c.l.b16 %v1197
        %v1214 = vunpack.c.l.b16 %v1198
        %v1215 = vunpack.c.l.b16 %v1199
        %v1216 = vpack.c.b16 %v1209, %v1208
        %v1217 = vpack.c.b16 %v1211, %v1210
        %v1218 = vpack.c.b16 %v1213, %v1212
        %v1219 = vpack.c.b16 %v1215, %v1214
        %v1225 = vsel %vm387, %v1190, 0
        %1227 = vmatprep.subr.bf16.mxu0 0
        %1228 = vmatpush1.bf16.msra.mxu0 %v1216
        %1229 = vmatprep.subr.bf16.mxu0 0
        %1230 = vmatpush1.bf16.msra.mxu0 %v1217
        %1231 = vmatprep.subr.bf16.mxu0 0
        %1232 = vmatpush1.bf16.msra.mxu0 %v1218
        %1233 = vmatprep.subr.bf16.mxu0 0
        %1234 = vmatpush1.bf16.msra.mxu0 %v1219
        %1235 = vmatprep.subr.bf16.mxu0 0
        %1236 = vmatpush1.bf16.msra.mxu0 0
        %1237 = vmatprep.subr.bf16.mxu0 0
        %1238 = vmatpush1.bf16.msra.mxu0 0
        %1239 = vmatprep.subr.bf16.mxu0 0
        %1240 = vmatpush1.bf16.msra.mxu0 0
        %1241 = vmatprep.subr.bf16.mxu0 0
        %1242 = vmatpush1.bf16.msra.mxu0 0
        %1243 = vmatprep.subr.bf16.mxu0 0
        %1244 = vmatpush1.bf16.msra.mxu0 0
        %1245 = vmatprep.subr.bf16.mxu0 0
        %1246 = vmatpush1.bf16.msra.mxu0 0
        %1247 = vmatprep.subr.bf16.mxu0 0
        %1248 = vmatpush1.bf16.msra.mxu0 0
        %1249 = vmatprep.subr.bf16.mxu0 0
        %1250 = vmatpush1.bf16.msra.mxu0 0
        %1251 = vmatprep.subr.bf16.mxu0 0
        %1252 = vmatpush1.bf16.msra.mxu0 0
        %1253 = vmatprep.subr.bf16.mxu0 0
        %1254 = vmatpush1.bf16.msra.mxu0 0
        %1255 = vmatprep.subr.bf16.mxu0 0
        %1256 = vmatpush1.bf16.msra.mxu0 0
        %1257 = vmatprep.subr.bf16.mxu0 0
        %1258 = vmatpush1.bf16.msra.mxu0 0
        %1259 = vmatprep.mubr.bf16.mxu0 0
        %1260 = vmatmul.mubr.bf16.gmra.mrb[0].mxu0 %v1225
        %v1261 = vpop.f32.mrb[0].mxu0
        %v1262 = vadd.f32 0.0, %v1261
        %v1263 = vpop.f32.mrb[0].mxu0
        %v1264 = vpop.f32.mrb[0].mxu0
        %v1265 = vadd.f32 0.0, %v1264
        %v1266 = vpop.f32.mrb[0].mxu0
        %1267 = vdwg.mxu0
        %v1268 = vadd.f32 %v1186, %v1262
        %v1269 = vadd.f32 %v1187, %v1265
        %v1270 = vld [vmem:[%s6] sm:$0x1]
        %v1272 = vlaneseq
        %v1273 = vshrl.u32 %v1272, 7
        %v1274 = vsub.s32 0, %v1273
        %v1275 = vrot.slane %v1270, %v1274
        %v1277 = vadd.f32 %v1268, %v1275
        %v1278 = vadd.f32 %v1269, %v1275
        %1279 = vst [vmem:[%s316] sm:$0xff] %v1277
        %1280 = vst [vmem:[%s316 + $0x8] sm:$0xff] %v1278
        %s1281 = sand.u32 %s188, 1
        %s1282 = scalar_lea.sflag [#allocation5], %s1281
        %s1283 = sand.u32 %s188, 1
        %s1284 = smul.addr %s1283, 16
        %s1285 = scalar_lea.vmem [#allocation8], %s1284
        // Predicated region
        $region57: #{tpu_custom_call.1} parent=47 // pred_check
          %p1286 = pneg %p198
        $region58: #{tpu_custom_call.1} parent=47 // pred_check_branch
          %1288 = sbr.rel (%p1286) target = $region60
        $region59: #{tpu_custom_call.1} parent=47 // pred_region
          %s1290 = ssub.s32 256, 256
          %1291 = vsyncadd %s1282, %s1290
          %s1292 = smul.addr %s23, 2
          %s1293 = smul.addr %s1292, 128
          %s1294 = scalar_lea.hbm %s7, %s1293
          %s1295 = sshll.u32 %s1285, 4
          %s1296 = int_to_ptr.vmem [resolvable:$true] %s1295
          %1301 = dma.vmem_to_hbm [thread:$0]  %s1296, 256, %s1294, %s1282, 128, 128, 8
        $region60: #{tpu_custom_call.1} parent=47 // pred_fallthru
          _
      $region48: #{tpu_custom_call.1} parent=5 // pred_fallthru
        _
      %p1302 = scmp.le.s32.totalorder 2, %s18
      // Predicated region
      $region61: #{tpu_custom_call.1} parent=5 // pred_check
        %p1303 = pneg %p1302
      $region62: #{tpu_custom_call.1} parent=5 // pred_check_branch
        %1305 = sbr.rel (%p1303) target = $region64
      $region63: #{tpu_custom_call.1} parent=5 // pred_region
        %s1306 = ssub.s32 %s18, 2
        // Predicated region
        $region65: #{tpu_custom_call.1} parent=63 // pred_check
          %p1307 = pneg %p204
        $region66: #{tpu_custom_call.1} parent=63 // pred_check_branch
          %1309 = sbr.rel (%p1307) target = $region68
        $region67: #{tpu_custom_call.1} parent=63 // pred_region
          %s1310 = sand.u32 %s189, 1
          %s1311 = scalar_lea.sflag [#allocation5], %s1310
          %s1312 = sand.u32 %s189, 1
          %s1313 = smul.addr %s1312, 16
          %s1314 = scalar_lea.vmem [#allocation8], %s1313
          %1315 = dma.done %s1311, 256
        $region68: #{tpu_custom_call.1} parent=63 // pred_fallthru
          _
      $region64: #{tpu_custom_call.1} parent=5 // pred_fallthru
        _
    $region6: #{tpu_custom_call.1} parent=1 // loop_footer
      %s22 = sadd.s32 1, %s18
    $region7: #{tpu_custom_call.1} parent=1 // loop_footer_branch
      %17 = sbr.rel target = $region3
    $region8: #{tpu_custom_call.1} parent=1 // loop_exit
      _
    %1316 = vsyncpa [#allocation4], 1
    %s1317 = scalar_lea.sflag [#allocation4], 1
    %1318 = vsyncpa %s1317, 1
    %1319 = vsyncpa [#allocation7], 1
    %1320 = vsyncpa [#allocation5], 1
    %s1321 = scalar_lea.sflag [#allocation5], 1
    %1322 = vsyncpa %s1321, 1

</llo_original>
